<compile_context>
chip_gen: v5e
topology: v5e:2x2
jax: 0.10.0
libtpu: 0.0.40
codegen_flags: <defaults>
</compile_context>

<pallas_src>
import functools

import jax
import jax.numpy as jnp
from jax.experimental import pallas as pl
from jax.experimental.pallas import tpu as pltpu


def _matmul_1x1(w, x):
    """w @ x for a 1x1 conv: w is (M, K), x is (K, L), spatial on lanes.

    For tiny K (<= 16 input channels) an unrolled VPU multiply-accumulate is
    used (MXU would be <1% utilized and pay push/drain latency); larger
    channel counts go through the MXU.
    """
    k_dim = w.shape[1]
    if k_dim <= 16:
        out = w[:, 0:1] * x[0:1, :]
        for k in range(1, k_dim):
            out = out + w[:, k:k + 1] * x[k:k + 1, :]
        return out
    return jnp.dot(w, x, preferred_element_type=jnp.float32)


def _inverted_residual_kernel(x_ref, w1_ref, s1_ref, b1_ref,
                              wdw_ref, s2_ref, b2_ref,
                              w3_ref, s3_ref, b3_ref,
                              o_ref, buf_ref,
                              *, H, W, pad, stride, kernel, use_res):
    Ch = w1_ref.shape[0]
    L = H * W
    p = kernel // 2

    x = x_ref[0].astype(jnp.float32)                        # (C, H*W)

    # ---- 1x1 expand conv + BN + ReLU6 --------------------------------------
    e = _matmul_1x1(w1_ref[...].astype(jnp.float32), x)     # (Ch, H*W)
    e = jnp.clip(e * s1_ref[...].astype(jnp.float32)
                 + b1_ref[...].astype(jnp.float32), 0.0, 6.0)

    # ---- depthwise kxk conv, padding = k//2, groups = Ch --------------------
    # Store e once into the interior of a zero-haloed flat row buffer; each
    # tap (di, dj) is then a shifted ref load at offset (di-p)*W + (dj-p).
    # The zero halo covers row under/overflow; an iota column mask covers the
    # column edges (flat row wrap-around).
    buf_ref[:, pl.ds(0, pad)] = jnp.zeros((Ch, pad), jnp.float32)
    buf_ref[:, pl.ds(pad + L, pad)] = jnp.zeros((Ch, pad), jnp.float32)
    buf_ref[:, pl.ds(pad, L)] = e

    col = jax.lax.broadcasted_iota(jnp.int32, (1, L), 1) % W
    col_mask = {dw: (col + dw >= 0) & (col + dw < W)
                for dw in range(-p, p + 1) if dw != 0}

    wdw = wdw_ref[...].astype(jnp.float32)                  # (Ch, k*k)
    acc = jnp.zeros((Ch, L), jnp.float32)
    for di in range(kernel):
        for dj in range(kernel):
            dh, dw = di - p, dj - p
            tap = buf_ref[:, pl.ds(pad + dh * W + dw, L)]   # (Ch, H*W)
            if dw != 0:
                tap = jnp.where(col_mask[dw], tap, 0.0)
            t = di * kernel + dj
            acc = acc + tap * wdw[:, t:t + 1]

    if stride == 1:
        d = acc                                             # (Ch, H*W)
    else:
        # Strided depthwise == stride-1 result sampled at the output
        # positions (odd kernel, pad = k//2); handles odd H/W correctly.
        # (Not exercised by the stride=1 test config below.)
        ho = (H - 1) // stride + 1
        wo = (W - 1) // stride + 1
        d = acc.reshape(Ch, H, W)[:, ::stride, ::stride].reshape(Ch, ho * wo)

    d = jnp.clip(d * s2_ref[...].astype(jnp.float32)
                 + b2_ref[...].astype(jnp.float32), 0.0, 6.0)

    # ---- 1x1 project conv + BN ---------------------------------------------
    o = _matmul_1x1(w3_ref[...].astype(jnp.float32), d)     # (Cout, Ho*Wo)
    o = o * s3_ref[...].astype(jnp.float32) + b3_ref[...].astype(jnp.float32)

    if use_res:
        o = o + x

    o_ref[0] = o.astype(o_ref.dtype)                        # lane-dense store


def inverted_residual(x_nchw, params, *, stride, kernel_size):
    assert stride in (1, 2)
    assert kernel_size % 2 == 1, "padding = k//2 assumes an odd kernel"
    N, C, H, W = x_nchw.shape
    Ch = params["w1"].shape[0]
    Cout = params["w3"].shape[0]
    Ho = (H - 1) // stride + 1
    Wo = (W - 1) // stride + 1
    use_res = (stride == 1 and C == Cout)

    p = kernel_size // 2
    # Halo of the flat depthwise row buffer, rounded up to a full lane group
    # so the interior store stays lane-aligned.
    pad = ((p * W + p + 127) // 128) * 128

    x = x_nchw.reshape(N, C, H * W)            # free reshape, stays NCHW order

    kern = functools.partial(_inverted_residual_kernel,
                             H=H, W=W, pad=pad, stride=stride,
                             kernel=kernel_size, use_res=use_res)

    def bcast(arr):
        zeros = (0,) * arr.ndim
        return pl.BlockSpec(arr.shape, lambda n: zeros)

    # NOTE: at real MnasNet sizes (H=W=112, Ch up to ~1920) the full-plane
    # block would need H-tiling with a k//2 halo plus an explicit
    # vmem_limit_bytes; at these test sizes every block is a few KB.
    out = pl.pallas_call(
        kern,
        out_shape=jax.ShapeDtypeStruct((N, Cout, Ho * Wo), x_nchw.dtype),
        grid=(N,),
        in_specs=[
            pl.BlockSpec((1, C, H * W), lambda n: (n, 0, 0)),
            bcast(params["w1"]), bcast(params["s1"]), bcast(params["b1"]),
            bcast(params["wdw"]), bcast(params["s2"]), bcast(params["b2"]),
            bcast(params["w3"]), bcast(params["s3"]), bcast(params["b3"]),
        ],
        out_specs=pl.BlockSpec((1, Cout, Ho * Wo), lambda n: (n, 0, 0)),
        scratch_shapes=[pltpu.VMEM((Ch, pad + H * W + pad), jnp.float32)],
        compiler_params=pltpu.CompilerParams(
            dimension_semantics=("parallel",)),
    )(x, params["w1"], params["s1"], params["b1"], params["wdw"],
      params["s2"], params["b2"], params["w3"], params["s3"], params["b3"])

    return out.reshape(N, Cout, Ho, Wo)        # free reshape, already NCHW


def make_params(key, c_in, c_out, expand_ratio, kernel_size, eps=1e-5):
    """Deterministic synthetic weights; BN folded to per-channel (scale, bias).

    Layouts match the kernel:
      w1  : (Ch, C)     1x1 expand
      wdw : (Ch, k*k)   depthwise, tap index = di*k + dj
      w3  : (Cout, Ch)  1x1 project
      s*, b* : (channels, 1) columns (broadcast over the spatial/lane axis)
    """
    ch = c_in * expand_ratio
    ks = jax.random.split(key, 12)

    def bn_fold(kg, kb, km, kv, n):
        gamma = 0.5 + jax.random.uniform(kg, (n,))
        beta = 0.1 * jax.random.normal(kb, (n,))
        rmean = 0.1 * jax.random.normal(km, (n,))
        rvar = 0.5 + jax.random.uniform(kv, (n,))
        scale = gamma / jnp.sqrt(rvar + eps)
        bias = beta - rmean * scale
        return scale.reshape(n, 1), bias.reshape(n, 1)

    w1 = 0.1 * jax.random.normal(ks[0], (ch, c_in), jnp.float32)
    s1, b1 = bn_fold(ks[1], ks[2], ks[3], ks[4], ch)
    wdw = 0.1 * jax.random.normal(ks[5], (ch, kernel_size * kernel_size),
                                  jnp.float32)
    s2, b2 = bn_fold(ks[6], ks[7], ks[8], ks[9], ch)
    w3 = 0.1 * jax.random.normal(ks[10], (c_out, ch), jnp.float32)
    s3, b3 = bn_fold(ks[11], ks[0], ks[1], ks[2], c_out)
    return dict(w1=w1, s1=s1, b1=b1, wdw=wdw, s2=s2, b2=b2,
                w3=w3, s3=s3, b3=b3)


def reference(x_nchw, params, *, stride, kernel_size):
    """Pure-JAX reference of the same forward pass (for validation)."""
    k = kernel_size
    N, C, H, W = x_nchw.shape
    Ch = params["w1"].shape[0]
    Cout = params["w3"].shape[0]
    hp = jax.lax.Precision.HIGHEST

    e = jnp.einsum("dc,nchw->ndhw", params["w1"], x_nchw, precision=hp)
    e = jnp.clip(e * params["s1"].reshape(1, Ch, 1, 1)
                 + params["b1"].reshape(1, Ch, 1, 1), 0.0, 6.0)
    d = jax.lax.conv_general_dilated(
        e, params["wdw"].reshape(Ch, 1, k, k), (stride, stride),
        [(k // 2, k // 2)] * 2,
        dimension_numbers=("NCHW", "OIHW", "NCHW"),
        feature_group_count=Ch, precision=hp)
    d = jnp.clip(d * params["s2"].reshape(1, Ch, 1, 1)
                 + params["b2"].reshape(1, Ch, 1, 1), 0.0, 6.0)
    o = jnp.einsum("dc,nchw->ndhw", params["w3"], d, precision=hp)
    o = o * params["s3"].reshape(1, Cout, 1, 1) + params["b3"].reshape(1, Cout, 1, 1)
    if stride == 1 and C == Cout:
        o = o + x_nchw
    return o


if __name__ == "__main__":
    # InvertedResidual(input=4, output=4, stride=1, expand_ratio=3, kernel=3)
    c_in, c_out, stride, expand_ratio, kernel_size = 4, 4, 1, 3, 3
    N, H, W = 2, 16, 16

    key = jax.random.PRNGKey(0)
    kx, kp = jax.random.split(key)
    x = jax.random.normal(kx, (N, c_in, H, W), jnp.float32)
    params = make_params(kp, c_in, c_out, expand_ratio, kernel_size)

    out = inverted_residual(x, params, stride=stride, kernel_size=kernel_size)
    out = jax.block_until_ready(out)

    ref = reference(x, params, stride=stride, kernel_size=kernel_size)
    assert out.shape == ref.shape, (out.shape, ref.shape)
    assert jnp.allclose(out, ref, rtol=1e-4, atol=1e-4), \
        float(jnp.max(jnp.abs(out - ref)))

    print("KERNEL_OK")
</pallas_src>

<mosaic_0001>
module attributes {stable_mosaic.version = 11 : i64} {
  func.func @_inverted_residual_kernel(%arg0: i32, %arg1: memref<1x4x256xf32, #tpu.memory_space<vmem>>, %arg2: memref<12x4xf32, #tpu.memory_space<vmem>>, %arg3: memref<12x1xf32, #tpu.memory_space<vmem>>, %arg4: memref<12x1xf32, #tpu.memory_space<vmem>>, %arg5: memref<12x9xf32, #tpu.memory_space<vmem>>, %arg6: memref<12x1xf32, #tpu.memory_space<vmem>>, %arg7: memref<12x1xf32, #tpu.memory_space<vmem>>, %arg8: memref<4x12xf32, #tpu.memory_space<vmem>>, %arg9: memref<4x1xf32, #tpu.memory_space<vmem>>, %arg10: memref<4x1xf32, #tpu.memory_space<vmem>>, %arg11: memref<1x4x256xf32, #tpu.memory_space<vmem>>, %arg12: memref<12x512xf32, #tpu.memory_space<vmem>>) attributes {dimension_semantics = [#tpu.dimension_semantics<parallel>], iteration_bounds = array<i64: 2>, scalar_prefetch = 0 : i64, scratch_operands = 1 : i64, tpu.core_type = #tpu.core_type<tc>, window_params = [{transform_indices = @transform_0, window_bounds = array<i64: 1, 4, 256>}, {pipeline_mode = #tpu.pipeline_mode<synchronous>, transform_indices = @transform_1, window_bounds = array<i64: 12, 4>}, {pipeline_mode = #tpu.pipeline_mode<synchronous>, transform_indices = @transform_2, window_bounds = array<i64: 12, 1>}, {pipeline_mode = #tpu.pipeline_mode<synchronous>, transform_indices = @transform_3, window_bounds = array<i64: 12, 1>}, {pipeline_mode = #tpu.pipeline_mode<synchronous>, transform_indices = @transform_4, window_bounds = array<i64: 12, 9>}, {pipeline_mode = #tpu.pipeline_mode<synchronous>, transform_indices = @transform_5, window_bounds = array<i64: 12, 1>}, {pipeline_mode = #tpu.pipeline_mode<synchronous>, transform_indices = @transform_6, window_bounds = array<i64: 12, 1>}, {pipeline_mode = #tpu.pipeline_mode<synchronous>, transform_indices = @transform_7, window_bounds = array<i64: 4, 12>}, {pipeline_mode = #tpu.pipeline_mode<synchronous>, transform_indices = @transform_8, window_bounds = array<i64: 4, 1>}, {pipeline_mode = #tpu.pipeline_mode<synchronous>, transform_indices = @transform_9, window_bounds = array<i64: 4, 1>}, {transform_indices = @transform_10, window_bounds = array<i64: 1, 4, 256>}]} {
    %c0 = arith.constant 0 : index
    %c0_0 = arith.constant 0 : index
    %c0_1 = arith.constant 0 : index
    %0 = vector.load %arg1[%c0, %c0_0, %c0_1] : memref<1x4x256xf32, #tpu.memory_space<vmem>>, vector<1x4x256xf32>
    %1 = vector.shape_cast %0 : vector<1x4x256xf32> to vector<4x256xf32>
    %c0_2 = arith.constant 0 : index
    %c0_3 = arith.constant 0 : index
    %2 = vector.load %arg2[%c0_2, %c0_3] : memref<12x4xf32, #tpu.memory_space<vmem>>, vector<12x4xf32>
    %3 = vector.extract_strided_slice %2 {offsets = [0, 0], sizes = [12, 1], strides = [1, 1]} : vector<12x4xf32> to vector<12x1xf32>
    %4 = vector.extract_strided_slice %1 {offsets = [0, 0], sizes = [1, 256], strides = [1, 1]} : vector<4x256xf32> to vector<1x256xf32>
    %5 = vector.broadcast %3 : vector<12x1xf32> to vector<12x256xf32>
    %6 = vector.broadcast %4 : vector<1x256xf32> to vector<12x256xf32>
    %7 = arith.mulf %5, %6 : vector<12x256xf32>
    %8 = vector.extract_strided_slice %2 {offsets = [0, 1], sizes = [12, 1], strides = [1, 1]} : vector<12x4xf32> to vector<12x1xf32>
    %9 = vector.extract_strided_slice %1 {offsets = [1, 0], sizes = [1, 256], strides = [1, 1]} : vector<4x256xf32> to vector<1x256xf32>
    %10 = vector.broadcast %8 : vector<12x1xf32> to vector<12x256xf32>
    %11 = vector.broadcast %9 : vector<1x256xf32> to vector<12x256xf32>
    %12 = arith.mulf %10, %11 : vector<12x256xf32>
    %13 = arith.addf %7, %12 : vector<12x256xf32>
    %14 = vector.extract_strided_slice %2 {offsets = [0, 2], sizes = [12, 1], strides = [1, 1]} : vector<12x4xf32> to vector<12x1xf32>
    %15 = vector.extract_strided_slice %1 {offsets = [2, 0], sizes = [1, 256], strides = [1, 1]} : vector<4x256xf32> to vector<1x256xf32>
    %16 = vector.broadcast %14 : vector<12x1xf32> to vector<12x256xf32>
    %17 = vector.broadcast %15 : vector<1x256xf32> to vector<12x256xf32>
    %18 = arith.mulf %16, %17 : vector<12x256xf32>
    %19 = arith.addf %13, %18 : vector<12x256xf32>
    %20 = vector.extract_strided_slice %2 {offsets = [0, 3], sizes = [12, 1], strides = [1, 1]} : vector<12x4xf32> to vector<12x1xf32>
    %21 = vector.extract_strided_slice %1 {offsets = [3, 0], sizes = [1, 256], strides = [1, 1]} : vector<4x256xf32> to vector<1x256xf32>
    %22 = vector.broadcast %20 : vector<12x1xf32> to vector<12x256xf32>
    %23 = vector.broadcast %21 : vector<1x256xf32> to vector<12x256xf32>
    %24 = arith.mulf %22, %23 : vector<12x256xf32>
    %25 = arith.addf %19, %24 : vector<12x256xf32>
    %c0_4 = arith.constant 0 : index
    %c0_5 = arith.constant 0 : index
    %26 = vector.load %arg3[%c0_4, %c0_5] : memref<12x1xf32, #tpu.memory_space<vmem>>, vector<12x1xf32>
    %27 = vector.broadcast %26 : vector<12x1xf32> to vector<12x256xf32>
    %28 = arith.mulf %25, %27 : vector<12x256xf32>
    %c0_6 = arith.constant 0 : index
    %c0_7 = arith.constant 0 : index
    %29 = vector.load %arg4[%c0_6, %c0_7] : memref<12x1xf32, #tpu.memory_space<vmem>>, vector<12x1xf32>
    %30 = vector.broadcast %29 : vector<12x1xf32> to vector<12x256xf32>
    %31 = arith.addf %28, %30 : vector<12x256xf32>
    %cst = arith.constant 0.000000e+00 : f32
    %cst_8 = arith.constant 6.000000e+00 : f32
    %32 = vector.broadcast %cst : f32 to vector<12x256xf32>
    %33 = arith.maximumf %32, %31 : vector<12x256xf32>
    %34 = vector.broadcast %cst_8 : f32 to vector<12x256xf32>
    %35 = arith.minimumf %34, %33 : vector<12x256xf32>
    %cst_9 = arith.constant 0.000000e+00 : f32
    %36 = vector.broadcast %cst_9 : f32 to vector<12x128xf32>
    %c0_10 = arith.constant 0 : index
    %c0_11 = arith.constant 0 : index
    %37 = vector.load %arg12[%c0_10, %c0_11] : memref<12x512xf32, #tpu.memory_space<vmem>>, vector<12x128xf32>
    tpu.vector_store %arg12[%c0_10, %c0_11], %36 {strides = array<i32>} : memref<12x512xf32, #tpu.memory_space<vmem>>, vector<12x128xf32>,
    %cst_12 = arith.constant 0.000000e+00 : f32
    %38 = vector.broadcast %cst_12 : f32 to vector<12x128xf32>
    %c0_13 = arith.constant 0 : index
    %c384 = arith.constant 384 : index
    %39 = vector.load %arg12[%c0_13, %c384] : memref<12x512xf32, #tpu.memory_space<vmem>>, vector<12x128xf32>
    tpu.vector_store %arg12[%c0_13, %c384], %38 {strides = array<i32>} : memref<12x512xf32, #tpu.memory_space<vmem>>, vector<12x128xf32>,
    %c0_14 = arith.constant 0 : index
    %c128 = arith.constant 128 : index
    %40 = vector.load %arg12[%c0_14, %c128] : memref<12x512xf32, #tpu.memory_space<vmem>>, vector<12x256xf32>
    tpu.vector_store %arg12[%c0_14, %c128], %35 {strides = array<i32>} : memref<12x512xf32, #tpu.memory_space<vmem>>, vector<12x256xf32>,
    %41 = tpu.iota {dimensions = array<i32: 1>} : vector<1x256xi32>
    %c16_i32 = arith.constant 16 : i32
    %c0_i32 = arith.constant 0 : i32
    %42 = arith.cmpi eq, %c16_i32, %c0_i32 : i32
    %c1_i32 = arith.constant 1 : i32
    %43 = arith.select %42, %c1_i32, %c16_i32 : i32
    %44 = vector.broadcast %43 : i32 to vector<1x256xi32>
    %45 = arith.remsi %41, %44 : vector<1x256xi32>
    %c0_i32_15 = arith.constant 0 : i32
    %46 = vector.broadcast %c0_i32_15 : i32 to vector<1x256xi32>
    %47 = arith.cmpi ne, %45, %46 : vector<1x256xi32>
    %c0_i32_16 = arith.constant 0 : i32
    %48 = vector.broadcast %c0_i32_16 : i32 to vector<1x256xi32>
    %49 = arith.cmpi slt, %45, %48 : vector<1x256xi32>
    %c0_i32_17 = arith.constant 0 : i32
    %50 = arith.cmpi slt, %43, %c0_i32_17 : i32
    %51 = vector.broadcast %50 : i1 to vector<1x256xi1>
    %52 = vector.broadcast %51 : vector<1x256xi1> to vector<1x256xi1>
    %53 = arith.xori %49, %52 : vector<1x256xi1>
    %54 = arith.andi %53, %47 : vector<1x256xi1>
    %55 = vector.broadcast %43 : i32 to vector<1x256xi32>
    %56 = arith.addi %45, %55 : vector<1x256xi32>
    %57 = arith.select %54, %56, %45 : vector<1x256xi1>, vector<1x256xi32>
    %c-1_i32 = arith.constant -1 : i32
    %58 = vector.broadcast %c-1_i32 : i32 to vector<1x256xi32>
    %59 = arith.addi %57, %58 : vector<1x256xi32>
    %c0_i32_18 = arith.constant 0 : i32
    %60 = vector.broadcast %c0_i32_18 : i32 to vector<1x256xi32>
    %61 = arith.cmpi sge, %59, %60 : vector<1x256xi32>
    %c-1_i32_19 = arith.constant -1 : i32
    %62 = vector.broadcast %c-1_i32_19 : i32 to vector<1x256xi32>
    %63 = arith.addi %57, %62 : vector<1x256xi32>
    %c16_i32_20 = arith.constant 16 : i32
    %64 = vector.broadcast %c16_i32_20 : i32 to vector<1x256xi32>
    %65 = arith.cmpi slt, %63, %64 : vector<1x256xi32>
    %66 = arith.andi %61, %65 : vector<1x256xi1>
    %c1_i32_21 = arith.constant 1 : i32
    %67 = vector.broadcast %c1_i32_21 : i32 to vector<1x256xi32>
    %68 = arith.addi %57, %67 : vector<1x256xi32>
    %c0_i32_22 = arith.constant 0 : i32
    %69 = vector.broadcast %c0_i32_22 : i32 to vector<1x256xi32>
    %70 = arith.cmpi sge, %68, %69 : vector<1x256xi32>
    %c1_i32_23 = arith.constant 1 : i32
    %71 = vector.broadcast %c1_i32_23 : i32 to vector<1x256xi32>
    %72 = arith.addi %57, %71 : vector<1x256xi32>
    %c16_i32_24 = arith.constant 16 : i32
    %73 = vector.broadcast %c16_i32_24 : i32 to vector<1x256xi32>
    %74 = arith.cmpi slt, %72, %73 : vector<1x256xi32>
    %75 = arith.andi %70, %74 : vector<1x256xi1>
    %c0_25 = arith.constant 0 : index
    %c0_26 = arith.constant 0 : index
    %76 = vector.load %arg5[%c0_25, %c0_26] : memref<12x9xf32, #tpu.memory_space<vmem>>, vector<12x9xf32>
    %cst_27 = arith.constant 0.000000e+00 : f32
    %77 = vector.broadcast %cst_27 : f32 to vector<12x256xf32>
    %c0_28 = arith.constant 0 : index
    %c111 = arith.constant 111 : index
    %78 = vector.load %arg12[%c0_28, %c111] : memref<12x512xf32, #tpu.memory_space<vmem>>, vector<12x256xf32>
    %cst_29 = arith.constant 0.000000e+00 : f32
    %79 = vector.shape_cast %66 : vector<1x256xi1> to vector<1x256xi1>
    %80 = vector.broadcast %79 : vector<1x256xi1> to vector<12x256xi1>
    %81 = vector.broadcast %cst_29 : f32 to vector<12x256xf32>
    %82 = arith.select %80, %78, %81 : vector<12x256xi1>, vector<12x256xf32>
    %83 = vector.extract_strided_slice %76 {offsets = [0, 0], sizes = [12, 1], strides = [1, 1]} : vector<12x9xf32> to vector<12x1xf32>
    %84 = vector.broadcast %83 : vector<12x1xf32> to vector<12x256xf32>
    %85 = arith.mulf %82, %84 : vector<12x256xf32>
    %86 = arith.addf %77, %85 : vector<12x256xf32>
    %c0_30 = arith.constant 0 : index
    %c112 = arith.constant 112 : index
    %87 = vector.load %arg12[%c0_30, %c112] : memref<12x512xf32, #tpu.memory_space<vmem>>, vector<12x256xf32>
    %88 = vector.extract_strided_slice %76 {offsets = [0, 1], sizes = [12, 1], strides = [1, 1]} : vector<12x9xf32> to vector<12x1xf32>
    %89 = vector.broadcast %88 : vector<12x1xf32> to vector<12x256xf32>
    %90 = arith.mulf %87, %89 : vector<12x256xf32>
    %91 = arith.addf %86, %90 : vector<12x256xf32>
    %c0_31 = arith.constant 0 : index
    %c113 = arith.constant 113 : index
    %92 = vector.load %arg12[%c0_31, %c113] : memref<12x512xf32, #tpu.memory_space<vmem>>, vector<12x256xf32>
    %cst_32 = arith.constant 0.000000e+00 : f32
    %93 = vector.shape_cast %75 : vector<1x256xi1> to vector<1x256xi1>
    %94 = vector.broadcast %93 : vector<1x256xi1> to vector<12x256xi1>
    %95 = vector.broadcast %cst_32 : f32 to vector<12x256xf32>
    %96 = arith.select %94, %92, %95 : vector<12x256xi1>, vector<12x256xf32>
    %97 = vector.extract_strided_slice %76 {offsets = [0, 2], sizes = [12, 1], strides = [1, 1]} : vector<12x9xf32> to vector<12x1xf32>
    %98 = vector.broadcast %97 : vector<12x1xf32> to vector<12x256xf32>
    %99 = arith.mulf %96, %98 : vector<12x256xf32>
    %100 = arith.addf %91, %99 : vector<12x256xf32>
    %c0_33 = arith.constant 0 : index
    %c127 = arith.constant 127 : index
    %101 = vector.load %arg12[%c0_33, %c127] : memref<12x512xf32, #tpu.memory_space<vmem>>, vector<12x256xf32>
    %cst_34 = arith.constant 0.000000e+00 : f32
    %102 = vector.shape_cast %66 : vector<1x256xi1> to vector<1x256xi1>
    %103 = vector.broadcast %102 : vector<1x256xi1> to vector<12x256xi1>
    %104 = vector.broadcast %cst_34 : f32 to vector<12x256xf32>
    %105 = arith.select %103, %101, %104 : vector<12x256xi1>, vector<12x256xf32>
    %106 = vector.extract_strided_slice %76 {offsets = [0, 3], sizes = [12, 1], strides = [1, 1]} : vector<12x9xf32> to vector<12x1xf32>
    %107 = vector.broadcast %106 : vector<12x1xf32> to vector<12x256xf32>
    %108 = arith.mulf %105, %107 : vector<12x256xf32>
    %109 = arith.addf %100, %108 : vector<12x256xf32>
    %c0_35 = arith.constant 0 : index
    %c128_36 = arith.constant 128 : index
    %110 = vector.load %arg12[%c0_35, %c128_36] : memref<12x512xf32, #tpu.memory_space<vmem>>, vector<12x256xf32>
    %111 = vector.extract_strided_slice %76 {offsets = [0, 4], sizes = [12, 1], strides = [1, 1]} : vector<12x9xf32> to vector<12x1xf32>
    %112 = vector.broadcast %111 : vector<12x1xf32> to vector<12x256xf32>
    %113 = arith.mulf %110, %112 : vector<12x256xf32>
    %114 = arith.addf %109, %113 : vector<12x256xf32>
    %c0_37 = arith.constant 0 : index
    %c129 = arith.constant 129 : index
    %115 = vector.load %arg12[%c0_37, %c129] : memref<12x512xf32, #tpu.memory_space<vmem>>, vector<12x256xf32>
    %cst_38 = arith.constant 0.000000e+00 : f32
    %116 = vector.shape_cast %75 : vector<1x256xi1> to vector<1x256xi1>
    %117 = vector.broadcast %116 : vector<1x256xi1> to vector<12x256xi1>
    %118 = vector.broadcast %cst_38 : f32 to vector<12x256xf32>
    %119 = arith.select %117, %115, %118 : vector<12x256xi1>, vector<12x256xf32>
    %120 = vector.extract_strided_slice %76 {offsets = [0, 5], sizes = [12, 1], strides = [1, 1]} : vector<12x9xf32> to vector<12x1xf32>
    %121 = vector.broadcast %120 : vector<12x1xf32> to vector<12x256xf32>
    %122 = arith.mulf %119, %121 : vector<12x256xf32>
    %123 = arith.addf %114, %122 : vector<12x256xf32>
    %c0_39 = arith.constant 0 : index
    %c143 = arith.constant 143 : index
    %124 = vector.load %arg12[%c0_39, %c143] : memref<12x512xf32, #tpu.memory_space<vmem>>, vector<12x256xf32>
    %cst_40 = arith.constant 0.000000e+00 : f32
    %125 = vector.shape_cast %66 : vector<1x256xi1> to vector<1x256xi1>
    %126 = vector.broadcast %125 : vector<1x256xi1> to vector<12x256xi1>
    %127 = vector.broadcast %cst_40 : f32 to vector<12x256xf32>
    %128 = arith.select %126, %124, %127 : vector<12x256xi1>, vector<12x256xf32>
    %129 = vector.extract_strided_slice %76 {offsets = [0, 6], sizes = [12, 1], strides = [1, 1]} : vector<12x9xf32> to vector<12x1xf32>
    %130 = vector.broadcast %129 : vector<12x1xf32> to vector<12x256xf32>
    %131 = arith.mulf %128, %130 : vector<12x256xf32>
    %132 = arith.addf %123, %131 : vector<12x256xf32>
    %c0_41 = arith.constant 0 : index
    %c144 = arith.constant 144 : index
    %133 = vector.load %arg12[%c0_41, %c144] : memref<12x512xf32, #tpu.memory_space<vmem>>, vector<12x256xf32>
    %134 = vector.extract_strided_slice %76 {offsets = [0, 7], sizes = [12, 1], strides = [1, 1]} : vector<12x9xf32> to vector<12x1xf32>
    %135 = vector.broadcast %134 : vector<12x1xf32> to vector<12x256xf32>
    %136 = arith.mulf %133, %135 : vector<12x256xf32>
    %137 = arith.addf %132, %136 : vector<12x256xf32>
    %c0_42 = arith.constant 0 : index
    %c145 = arith.constant 145 : index
    %138 = vector.load %arg12[%c0_42, %c145] : memref<12x512xf32, #tpu.memory_space<vmem>>, vector<12x256xf32>
    %cst_43 = arith.constant 0.000000e+00 : f32
    %139 = vector.shape_cast %75 : vector<1x256xi1> to vector<1x256xi1>
    %140 = vector.broadcast %139 : vector<1x256xi1> to vector<12x256xi1>
    %141 = vector.broadcast %cst_43 : f32 to vector<12x256xf32>
    %142 = arith.select %140, %138, %141 : vector<12x256xi1>, vector<12x256xf32>
    %143 = vector.extract_strided_slice %76 {offsets = [0, 8], sizes = [12, 1], strides = [1, 1]} : vector<12x9xf32> to vector<12x1xf32>
    %144 = vector.broadcast %143 : vector<12x1xf32> to vector<12x256xf32>
    %145 = arith.mulf %142, %144 : vector<12x256xf32>
    %146 = arith.addf %137, %145 : vector<12x256xf32>
    %c0_44 = arith.constant 0 : index
    %c0_45 = arith.constant 0 : index
    %147 = vector.load %arg6[%c0_44, %c0_45] : memref<12x1xf32, #tpu.memory_space<vmem>>, vector<12x1xf32>
    %148 = vector.broadcast %147 : vector<12x1xf32> to vector<12x256xf32>
    %149 = arith.mulf %146, %148 : vector<12x256xf32>
    %c0_46 = arith.constant 0 : index
    %c0_47 = arith.constant 0 : index
    %150 = vector.load %arg7[%c0_46, %c0_47] : memref<12x1xf32, #tpu.memory_space<vmem>>, vector<12x1xf32>
    %151 = vector.broadcast %150 : vector<12x1xf32> to vector<12x256xf32>
    %152 = arith.addf %149, %151 : vector<12x256xf32>
    %cst_48 = arith.constant 0.000000e+00 : f32
    %cst_49 = arith.constant 6.000000e+00 : f32
    %153 = vector.broadcast %cst_48 : f32 to vector<12x256xf32>
    %154 = arith.maximumf %153, %152 : vector<12x256xf32>
    %155 = vector.broadcast %cst_49 : f32 to vector<12x256xf32>
    %156 = arith.minimumf %155, %154 : vector<12x256xf32>
    %c0_50 = arith.constant 0 : index
    %c0_51 = arith.constant 0 : index
    %157 = vector.load %arg8[%c0_50, %c0_51] : memref<4x12xf32, #tpu.memory_space<vmem>>, vector<4x12xf32>
    %158 = vector.extract_strided_slice %157 {offsets = [0, 0], sizes = [4, 1], strides = [1, 1]} : vector<4x12xf32> to vector<4x1xf32>
    %159 = vector.extract_strided_slice %156 {offsets = [0, 0], sizes = [1, 256], strides = [1, 1]} : vector<12x256xf32> to vector<1x256xf32>
    %160 = vector.broadcast %158 : vector<4x1xf32> to vector<4x256xf32>
    %161 = vector.broadcast %159 : vector<1x256xf32> to vector<4x256xf32>
    %162 = arith.mulf %160, %161 : vector<4x256xf32>
    %163 = vector.extract_strided_slice %157 {offsets = [0, 1], sizes = [4, 1], strides = [1, 1]} : vector<4x12xf32> to vector<4x1xf32>
    %164 = vector.extract_strided_slice %156 {offsets = [1, 0], sizes = [1, 256], strides = [1, 1]} : vector<12x256xf32> to vector<1x256xf32>
    %165 = vector.broadcast %163 : vector<4x1xf32> to vector<4x256xf32>
    %166 = vector.broadcast %164 : vector<1x256xf32> to vector<4x256xf32>
    %167 = arith.mulf %165, %166 : vector<4x256xf32>
    %168 = arith.addf %162, %167 : vector<4x256xf32>
    %169 = vector.extract_strided_slice %157 {offsets = [0, 2], sizes = [4, 1], strides = [1, 1]} : vector<4x12xf32> to vector<4x1xf32>
    %170 = vector.extract_strided_slice %156 {offsets = [2, 0], sizes = [1, 256], strides = [1, 1]} : vector<12x256xf32> to vector<1x256xf32>
    %171 = vector.broadcast %169 : vector<4x1xf32> to vector<4x256xf32>
    %172 = vector.broadcast %170 : vector<1x256xf32> to vector<4x256xf32>
    %173 = arith.mulf %171, %172 : vector<4x256xf32>
    %174 = arith.addf %168, %173 : vector<4x256xf32>
    %175 = vector.extract_strided_slice %157 {offsets = [0, 3], sizes = [4, 1], strides = [1, 1]} : vector<4x12xf32> to vector<4x1xf32>
    %176 = vector.extract_strided_slice %156 {offsets = [3, 0], sizes = [1, 256], strides = [1, 1]} : vector<12x256xf32> to vector<1x256xf32>
    %177 = vector.broadcast %175 : vector<4x1xf32> to vector<4x256xf32>
    %178 = vector.broadcast %176 : vector<1x256xf32> to vector<4x256xf32>
    %179 = arith.mulf %177, %178 : vector<4x256xf32>
    %180 = arith.addf %174, %179 : vector<4x256xf32>
    %181 = vector.extract_strided_slice %157 {offsets = [0, 4], sizes = [4, 1], strides = [1, 1]} : vector<4x12xf32> to vector<4x1xf32>
    %182 = vector.extract_strided_slice %156 {offsets = [4, 0], sizes = [1, 256], strides = [1, 1]} : vector<12x256xf32> to vector<1x256xf32>
    %183 = vector.broadcast %181 : vector<4x1xf32> to vector<4x256xf32>
    %184 = vector.broadcast %182 : vector<1x256xf32> to vector<4x256xf32>
    %185 = arith.mulf %183, %184 : vector<4x256xf32>
    %186 = arith.addf %180, %185 : vector<4x256xf32>
    %187 = vector.extract_strided_slice %157 {offsets = [0, 5], sizes = [4, 1], strides = [1, 1]} : vector<4x12xf32> to vector<4x1xf32>
    %188 = vector.extract_strided_slice %156 {offsets = [5, 0], sizes = [1, 256], strides = [1, 1]} : vector<12x256xf32> to vector<1x256xf32>
    %189 = vector.broadcast %187 : vector<4x1xf32> to vector<4x256xf32>
    %190 = vector.broadcast %188 : vector<1x256xf32> to vector<4x256xf32>
    %191 = arith.mulf %189, %190 : vector<4x256xf32>
    %192 = arith.addf %186, %191 : vector<4x256xf32>
    %193 = vector.extract_strided_slice %157 {offsets = [0, 6], sizes = [4, 1], strides = [1, 1]} : vector<4x12xf32> to vector<4x1xf32>
    %194 = vector.extract_strided_slice %156 {offsets = [6, 0], sizes = [1, 256], strides = [1, 1]} : vector<12x256xf32> to vector<1x256xf32>
    %195 = vector.broadcast %193 : vector<4x1xf32> to vector<4x256xf32>
    %196 = vector.broadcast %194 : vector<1x256xf32> to vector<4x256xf32>
    %197 = arith.mulf %195, %196 : vector<4x256xf32>
    %198 = arith.addf %192, %197 : vector<4x256xf32>
    %199 = vector.extract_strided_slice %157 {offsets = [0, 7], sizes = [4, 1], strides = [1, 1]} : vector<4x12xf32> to vector<4x1xf32>
    %200 = vector.extract_strided_slice %156 {offsets = [7, 0], sizes = [1, 256], strides = [1, 1]} : vector<12x256xf32> to vector<1x256xf32>
    %201 = vector.broadcast %199 : vector<4x1xf32> to vector<4x256xf32>
    %202 = vector.broadcast %200 : vector<1x256xf32> to vector<4x256xf32>
    %203 = arith.mulf %201, %202 : vector<4x256xf32>
    %204 = arith.addf %198, %203 : vector<4x256xf32>
    %205 = vector.extract_strided_slice %157 {offsets = [0, 8], sizes = [4, 1], strides = [1, 1]} : vector<4x12xf32> to vector<4x1xf32>
    %206 = vector.extract_strided_slice %156 {offsets = [8, 0], sizes = [1, 256], strides = [1, 1]} : vector<12x256xf32> to vector<1x256xf32>
    %207 = vector.broadcast %205 : vector<4x1xf32> to vector<4x256xf32>
    %208 = vector.broadcast %206 : vector<1x256xf32> to vector<4x256xf32>
    %209 = arith.mulf %207, %208 : vector<4x256xf32>
    %210 = arith.addf %204, %209 : vector<4x256xf32>
    %211 = vector.extract_strided_slice %157 {offsets = [0, 9], sizes = [4, 1], strides = [1, 1]} : vector<4x12xf32> to vector<4x1xf32>
    %212 = vector.extract_strided_slice %156 {offsets = [9, 0], sizes = [1, 256], strides = [1, 1]} : vector<12x256xf32> to vector<1x256xf32>
    %213 = vector.broadcast %211 : vector<4x1xf32> to vector<4x256xf32>
    %214 = vector.broadcast %212 : vector<1x256xf32> to vector<4x256xf32>
    %215 = arith.mulf %213, %214 : vector<4x256xf32>
    %216 = arith.addf %210, %215 : vector<4x256xf32>
    %217 = vector.extract_strided_slice %157 {offsets = [0, 10], sizes = [4, 1], strides = [1, 1]} : vector<4x12xf32> to vector<4x1xf32>
    %218 = vector.extract_strided_slice %156 {offsets = [10, 0], sizes = [1, 256], strides = [1, 1]} : vector<12x256xf32> to vector<1x256xf32>
    %219 = vector.broadcast %217 : vector<4x1xf32> to vector<4x256xf32>
    %220 = vector.broadcast %218 : vector<1x256xf32> to vector<4x256xf32>
    %221 = arith.mulf %219, %220 : vector<4x256xf32>
    %222 = arith.addf %216, %221 : vector<4x256xf32>
    %223 = vector.extract_strided_slice %157 {offsets = [0, 11], sizes = [4, 1], strides = [1, 1]} : vector<4x12xf32> to vector<4x1xf32>
    %224 = vector.extract_strided_slice %156 {offsets = [11, 0], sizes = [1, 256], strides = [1, 1]} : vector<12x256xf32> to vector<1x256xf32>
    %225 = vector.broadcast %223 : vector<4x1xf32> to vector<4x256xf32>
    %226 = vector.broadcast %224 : vector<1x256xf32> to vector<4x256xf32>
    %227 = arith.mulf %225, %226 : vector<4x256xf32>
    %228 = arith.addf %222, %227 : vector<4x256xf32>
    %c0_52 = arith.constant 0 : index
    %c0_53 = arith.constant 0 : index
    %229 = vector.load %arg9[%c0_52, %c0_53] : memref<4x1xf32, #tpu.memory_space<vmem>>, vector<4x1xf32>
    %230 = vector.broadcast %229 : vector<4x1xf32> to vector<4x256xf32>
    %231 = arith.mulf %228, %230 : vector<4x256xf32>
    %c0_54 = arith.constant 0 : index
    %c0_55 = arith.constant 0 : index
    %232 = vector.load %arg10[%c0_54, %c0_55] : memref<4x1xf32, #tpu.memory_space<vmem>>, vector<4x1xf32>
    %233 = vector.broadcast %232 : vector<4x1xf32> to vector<4x256xf32>
    %234 = arith.addf %231, %233 : vector<4x256xf32>
    %235 = arith.addf %234, %1 : vector<4x256xf32>
    %c0_56 = arith.constant 0 : index
    %c0_57 = arith.constant 0 : index
    %c0_58 = arith.constant 0 : index
    %236 = vector.load %arg11[%c0_56, %c0_57, %c0_58] : memref<1x4x256xf32, #tpu.memory_space<vmem>>, vector<1x4x256xf32>
    %237 = vector.shape_cast %236 : vector<1x4x256xf32> to vector<4x256xf32>
    %238 = vector.shape_cast %235 : vector<4x256xf32> to vector<1x4x256xf32>
    tpu.vector_store %arg11[%c0_56, %c0_57, %c0_58], %238 {strides = array<i32>} : memref<1x4x256xf32, #tpu.memory_space<vmem>>, vector<1x4x256xf32>,
    return
  }
  func.func @transform_0(%arg0: i32) -> (i32, i32, i32) {
    %c0_i32 = arith.constant 0 : i32
    %c0_i32_0 = arith.constant 0 : i32
    %c0_i32_1 = arith.constant 0 : i32
    return %arg0, %c0_i32, %c0_i32_0 : i32, i32, i32
  }
  func.func @transform_1(%arg0: i32) -> (i32, i32) {
    %c0_i32 = arith.constant 0 : i32
    %c0_i32_0 = arith.constant 0 : i32
    %c0_i32_1 = arith.constant 0 : i32
    return %c0_i32, %c0_i32_0 : i32, i32
  }
  func.func @transform_2(%arg0: i32) -> (i32, i32) {
    %c0_i32 = arith.constant 0 : i32
    %c0_i32_0 = arith.constant 0 : i32
    %c0_i32_1 = arith.constant 0 : i32
    return %c0_i32, %c0_i32_0 : i32, i32
  }
  func.func @transform_3(%arg0: i32) -> (i32, i32) {
    %c0_i32 = arith.constant 0 : i32
    %c0_i32_0 = arith.constant 0 : i32
    %c0_i32_1 = arith.constant 0 : i32
    return %c0_i32, %c0_i32_0 : i32, i32
  }
  func.func @transform_4(%arg0: i32) -> (i32, i32) {
    %c0_i32 = arith.constant 0 : i32
    %c0_i32_0 = arith.constant 0 : i32
    %c0_i32_1 = arith.constant 0 : i32
    return %c0_i32, %c0_i32_0 : i32, i32
  }
  func.func @transform_5(%arg0: i32) -> (i32, i32) {
    %c0_i32 = arith.constant 0 : i32
    %c0_i32_0 = arith.constant 0 : i32
    %c0_i32_1 = arith.constant 0 : i32
    return %c0_i32, %c0_i32_0 : i32, i32
  }
  func.func @transform_6(%arg0: i32) -> (i32, i32) {
    %c0_i32 = arith.constant 0 : i32
    %c0_i32_0 = arith.constant 0 : i32
    %c0_i32_1 = arith.constant 0 : i32
    return %c0_i32, %c0_i32_0 : i32, i32
  }
  func.func @transform_7(%arg0: i32) -> (i32, i32) {
    %c0_i32 = arith.constant 0 : i32
    %c0_i32_0 = arith.constant 0 : i32
    %c0_i32_1 = arith.constant 0 : i32
    return %c0_i32, %c0_i32_0 : i32, i32
  }
  func.func @transform_8(%arg0: i32) -> (i32, i32) {
    %c0_i32 = arith.constant 0 : i32
    %c0_i32_0 = arith.constant 0 : i32
    %c0_i32_1 = arith.constant 0 : i32
    return %c0_i32, %c0_i32_0 : i32, i32
  }
  func.func @transform_9(%arg0: i32) -> (i32, i32) {
    %c0_i32 = arith.constant 0 : i32
    %c0_i32_0 = arith.constant 0 : i32
    %c0_i32_1 = arith.constant 0 : i32
    return %c0_i32, %c0_i32_0 : i32, i32
  }
  func.func @transform_10(%arg0: i32) -> (i32, i32, i32) {
    %c0_i32 = arith.constant 0 : i32
    %c0_i32_0 = arith.constant 0 : i32
    %c0_i32_1 = arith.constant 0 : i32
    return %arg0, %c0_i32, %c0_i32_0 : i32, i32, i32
  }
}

</mosaic_0001>

<llo_original>
// kernel: tpu_custom_call.1
$region0: #{tpu_custom_call.1}
  #allocation0 [shape = 'u32[]', space=smem, size = 0x4, offset = 0x4, fixed_abs, tag = 'smem constant byte address 0x4 - core index']
  #allocation1 [shape = 'u32[72,128]{1,0:T(1,128)}', space=vmem, size = 0x9000, scoped, tag = 'internal scratch']
  #allocation2 [shape = 'f32[12,512]{1,0:T(8,128)}', space=vmem, size = 0x8000, scoped, tag = 'scratch operand']
  %s0 = inlined_call_operand.vmem [shape: f32[2,4,256], index: 0, kind: input, shape index: {}]
  %s1 = inlined_call_operand.vmem [shape: f32[12,4], index: 1, kind: input, shape index: {}]
  %s2 = inlined_call_operand.vmem [shape: f32[12,1], index: 2, kind: input, shape index: {}]
  %s3 = inlined_call_operand.vmem [shape: f32[12,1], index: 3, kind: input, shape index: {}]
  %s4 = inlined_call_operand.vmem [shape: f32[12,9], index: 4, kind: input, shape index: {}]
  %s5 = inlined_call_operand.vmem [shape: f32[12,1], index: 5, kind: input, shape index: {}]
  %s6 = inlined_call_operand.vmem [shape: f32[12,1], index: 6, kind: input, shape index: {}]
  %s7 = inlined_call_operand.vmem [shape: f32[4,12], index: 7, kind: input, shape index: {}]
  %s8 = inlined_call_operand.vmem [shape: f32[4,1], index: 8, kind: input, shape index: {}]
  %s9 = inlined_call_operand.vmem [shape: f32[4,1], index: 9, kind: input, shape index: {}]
  %s10 = inlined_call_operand.hbm [shape: f32[2,4,256], index: 10, kind: output, shape index: {}]
  %s11 = sld [smem:[#allocation0]]
  $region73: #{tpu_custom_call.1} parent=0
    _
  %s13 = ssub.s32 1, %s11
  %s14 = scalar_select 0, %s13, %s11
  $region1: #{tpu_custom_call.1} parent=0
    #allocation3 [shape = 'u8[8192]{0}', space=vmem, size = 0x2000, scoped, tag = 'output window, operand 0']
    #allocation4 [shape = 's32[2]{0}', space=sflag, size = 0x8, scoped, tag = 'scoped memory for tpu_custom_call.1']
    %15 = vsyncpa [#allocation4], 0
    %s16 = scalar_lea.sflag [#allocation4], 1
    %17 = vsyncpa %s16, 0
    loop: start=0, step=1, limit=4
    $region2: #{tpu_custom_call.1} parent=1 // loop_pre_header
      _
    $region3: #{tpu_custom_call.1} parent=1 // loop_header
      %s19 = sphi 0, %s23
      %p20 = scmp.ge.s32.totalorder %s19, 4
      %s29 = sphi 0, %s31
      %s32 = sphi 0, %s29
      %s33 = sphi 0, %s32
      %s49 = sphi 0, %s33
      %s53 = sphi 0, %s53
      %s55 = sphi 0, %s53
      %s56 = sphi 0, %s55
      %s70 = sphi 0, %s56
      %s74 = sphi 0, %s74
      %s76 = sphi 0, %s74
      %s77 = sphi 0, %s76
      %s91 = sphi 0, %s77
      %s95 = sphi 0, %s95
      %s97 = sphi 0, %s95
      %s98 = sphi 0, %s97
      %s112 = sphi 0, %s98
      %s116 = sphi 0, %s116
      %s118 = sphi 0, %s116
      %s119 = sphi 0, %s118
      %s133 = sphi 0, %s119
      %s137 = sphi 0, %s137
      %s139 = sphi 0, %s137
      %s140 = sphi 0, %s139
      %s154 = sphi 0, %s140
      %s158 = sphi 0, %s158
      %s160 = sphi 0, %s158
      %s161 = sphi 0, %s160
      %s175 = sphi 0, %s161
      %s179 = sphi 0, %s179
      %s181 = sphi 0, %s179
      %s182 = sphi 0, %s181
      %s196 = sphi 0, %s182
      %s200 = sphi 0, %s200
      %s202 = sphi 0, %s200
      %s203 = sphi 0, %s202
      %s217 = sphi 0, %s203
      %s221 = sphi 0, %s221
      %s223 = sphi 0, %s221
      %s224 = sphi 0, %s223
      %s238 = sphi 0, %s224
      %s244 = sphi 0, %s246
      %s247 = sphi 0, %s244
      %s248 = sphi 0, %s247
      %s264 = sphi 0, %s248
    $region4: #{tpu_custom_call.1} parent=1 // loop_header_branch
      %22 = sbr.rel (%p20) target = $region8
    $region5: #{tpu_custom_call.1} parent=1 // loop_body
      %s24 = ssub.s32 %s19, 1
      %s25 = ssub.s32 %s19, 2
      %s26 = sadd.s32 %s19, 1
      %s27 = ssub.s32 %s19, %s26
      %p28 = scmp.eq.s32.totalorder %s27, 0
      %s30 = sadd.s32 %s29, 1
      %s31 = scalar_select %p28, %s29, %s30
      %p34 = pneg %p28
      %p35 = scmp.eq.s32.totalorder %s19, 1
      %p36 = por %p34, %p35
      %p37 = scmp.ne.s32.totalorder %s29, %s32
      %p38 = scmp.eq.s32.totalorder %s19, 0
      %p39 = por %p37, %p38
      %p40 = scmp.ne.s32.totalorder %s29, %s32
      %p41 = scmp.eq.s32.totalorder %s24, 1
      %p42 = por %p40, %p41
      %p43 = scmp.ne.s32.totalorder %s32, %s33
      %p44 = scmp.eq.s32.totalorder %s24, 0
      %p45 = por %p43, %p44
      %p46 = scmp.ne.s32.totalorder %s32, %s33
      %p47 = scmp.eq.s32.totalorder %s25, 1
      %p48 = por %p46, %p47
      %p50 = scmp.ne.s32.totalorder %s33, %s49
      %p51 = scmp.eq.s32.totalorder %s25, 0
      %p52 = por %p50, %p51
      %s54 = sadd.s32 %s53, 1
      %p57 = scmp.eq.s32.totalorder %s19, 1
      %p58 = scmp.ne.s32.totalorder %s53, %s55
      %p59 = scmp.eq.s32.totalorder %s19, 0
      %p60 = por %p58, %p59
      %p61 = scmp.ne.s32.totalorder %s53, %s55
      %p62 = scmp.eq.s32.totalorder %s24, 1
      %p63 = por %p61, %p62
      %p64 = scmp.ne.s32.totalorder %s55, %s56
      %p65 = scmp.eq.s32.totalorder %s24, 0
      %p66 = por %p64, %p65
      %p67 = scmp.ne.s32.totalorder %s55, %s56
      %p68 = scmp.eq.s32.totalorder %s25, 1
      %p69 = por %p67, %p68
      %p71 = scmp.ne.s32.totalorder %s56, %s70
      %p72 = scmp.eq.s32.totalorder %s25, 0
      %p73 = por %p71, %p72
      %s75 = sadd.s32 %s74, 1
      %p78 = scmp.eq.s32.totalorder %s19, 1
      %p79 = scmp.ne.s32.totalorder %s74, %s76
      %p80 = scmp.eq.s32.totalorder %s19, 0
      %p81 = por %p79, %p80
      %p82 = scmp.ne.s32.totalorder %s74, %s76
      %p83 = scmp.eq.s32.totalorder %s24, 1
      %p84 = por %p82, %p83
      %p85 = scmp.ne.s32.totalorder %s76, %s77
      %p86 = scmp.eq.s32.totalorder %s24, 0
      %p87 = por %p85, %p86
      %p88 = scmp.ne.s32.totalorder %s76, %s77
      %p89 = scmp.eq.s32.totalorder %s25, 1
      %p90 = por %p88, %p89
      %p92 = scmp.ne.s32.totalorder %s77, %s91
      %p93 = scmp.eq.s32.totalorder %s25, 0
      %p94 = por %p92, %p93
      %s96 = sadd.s32 %s95, 1
      %p99 = scmp.eq.s32.totalorder %s19, 1
      %p100 = scmp.ne.s32.totalorder %s95, %s97
      %p101 = scmp.eq.s32.totalorder %s19, 0
      %p102 = por %p100, %p101
      %p103 = scmp.ne.s32.totalorder %s95, %s97
      %p104 = scmp.eq.s32.totalorder %s24, 1
      %p105 = por %p103, %p104
      %p106 = scmp.ne.s32.totalorder %s97, %s98
      %p107 = scmp.eq.s32.totalorder %s24, 0
      %p108 = por %p106, %p107
      %p109 = scmp.ne.s32.totalorder %s97, %s98
      %p110 = scmp.eq.s32.totalorder %s25, 1
      %p111 = por %p109, %p110
      %p113 = scmp.ne.s32.totalorder %s98, %s112
      %p114 = scmp.eq.s32.totalorder %s25, 0
      %p115 = por %p113, %p114
      %s117 = sadd.s32 %s116, 1
      %p120 = scmp.eq.s32.totalorder %s19, 1
      %p121 = scmp.ne.s32.totalorder %s116, %s118
      %p122 = scmp.eq.s32.totalorder %s19, 0
      %p123 = por %p121, %p122
      %p124 = scmp.ne.s32.totalorder %s116, %s118
      %p125 = scmp.eq.s32.totalorder %s24, 1
      %p126 = por %p124, %p125
      %p127 = scmp.ne.s32.totalorder %s118, %s119
      %p128 = scmp.eq.s32.totalorder %s24, 0
      %p129 = por %p127, %p128
      %p130 = scmp.ne.s32.totalorder %s118, %s119
      %p131 = scmp.eq.s32.totalorder %s25, 1
      %p132 = por %p130, %p131
      %p134 = scmp.ne.s32.totalorder %s119, %s133
      %p135 = scmp.eq.s32.totalorder %s25, 0
      %p136 = por %p134, %p135
      %s138 = sadd.s32 %s137, 1
      %p141 = scmp.eq.s32.totalorder %s19, 1
      %p142 = scmp.ne.s32.totalorder %s137, %s139
      %p143 = scmp.eq.s32.totalorder %s19, 0
      %p144 = por %p142, %p143
      %p145 = scmp.ne.s32.totalorder %s137, %s139
      %p146 = scmp.eq.s32.totalorder %s24, 1
      %p147 = por %p145, %p146
      %p148 = scmp.ne.s32.totalorder %s139, %s140
      %p149 = scmp.eq.s32.totalorder %s24, 0
      %p150 = por %p148, %p149
      %p151 = scmp.ne.s32.totalorder %s139, %s140
      %p152 = scmp.eq.s32.totalorder %s25, 1
      %p153 = por %p151, %p152
      %p155 = scmp.ne.s32.totalorder %s140, %s154
      %p156 = scmp.eq.s32.totalorder %s25, 0
      %p157 = por %p155, %p156
      %s159 = sadd.s32 %s158, 1
      %p162 = scmp.eq.s32.totalorder %s19, 1
      %p163 = scmp.ne.s32.totalorder %s158, %s160
      %p164 = scmp.eq.s32.totalorder %s19, 0
      %p165 = por %p163, %p164
      %p166 = scmp.ne.s32.totalorder %s158, %s160
      %p167 = scmp.eq.s32.totalorder %s24, 1
      %p168 = por %p166, %p167
      %p169 = scmp.ne.s32.totalorder %s160, %s161
      %p170 = scmp.eq.s32.totalorder %s24, 0
      %p171 = por %p169, %p170
      %p172 = scmp.ne.s32.totalorder %s160, %s161
      %p173 = scmp.eq.s32.totalorder %s25, 1
      %p174 = por %p172, %p173
      %p176 = scmp.ne.s32.totalorder %s161, %s175
      %p177 = scmp.eq.s32.totalorder %s25, 0
      %p178 = por %p176, %p177
      %s180 = sadd.s32 %s179, 1
      %p183 = scmp.eq.s32.totalorder %s19, 1
      %p184 = scmp.ne.s32.totalorder %s179, %s181
      %p185 = scmp.eq.s32.totalorder %s19, 0
      %p186 = por %p184, %p185
      %p187 = scmp.ne.s32.totalorder %s179, %s181
      %p188 = scmp.eq.s32.totalorder %s24, 1
      %p189 = por %p187, %p188
      %p190 = scmp.ne.s32.totalorder %s181, %s182
      %p191 = scmp.eq.s32.totalorder %s24, 0
      %p192 = por %p190, %p191
      %p193 = scmp.ne.s32.totalorder %s181, %s182
      %p194 = scmp.eq.s32.totalorder %s25, 1
      %p195 = por %p193, %p194
      %p197 = scmp.ne.s32.totalorder %s182, %s196
      %p198 = scmp.eq.s32.totalorder %s25, 0
      %p199 = por %p197, %p198
      %s201 = sadd.s32 %s200, 1
      %p204 = scmp.eq.s32.totalorder %s19, 1
      %p205 = scmp.ne.s32.totalorder %s200, %s202
      %p206 = scmp.eq.s32.totalorder %s19, 0
      %p207 = por %p205, %p206
      %p208 = scmp.ne.s32.totalorder %s200, %s202
      %p209 = scmp.eq.s32.totalorder %s24, 1
      %p210 = por %p208, %p209
      %p211 = scmp.ne.s32.totalorder %s202, %s203
      %p212 = scmp.eq.s32.totalorder %s24, 0
      %p213 = por %p211, %p212
      %p214 = scmp.ne.s32.totalorder %s202, %s203
      %p215 = scmp.eq.s32.totalorder %s25, 1
      %p216 = por %p214, %p215
      %p218 = scmp.ne.s32.totalorder %s203, %s217
      %p219 = scmp.eq.s32.totalorder %s25, 0
      %p220 = por %p218, %p219
      %s222 = sadd.s32 %s221, 1
      %p225 = scmp.eq.s32.totalorder %s19, 1
      %p226 = scmp.ne.s32.totalorder %s221, %s223
      %p227 = scmp.eq.s32.totalorder %s19, 0
      %p228 = por %p226, %p227
      %p229 = scmp.ne.s32.totalorder %s221, %s223
      %p230 = scmp.eq.s32.totalorder %s24, 1
      %p231 = por %p229, %p230
      %p232 = scmp.ne.s32.totalorder %s223, %s224
      %p233 = scmp.eq.s32.totalorder %s24, 0
      %p234 = por %p232, %p233
      %p235 = scmp.ne.s32.totalorder %s223, %s224
      %p236 = scmp.eq.s32.totalorder %s25, 1
      %p237 = por %p235, %p236
      %p239 = scmp.ne.s32.totalorder %s224, %s238
      %p240 = scmp.eq.s32.totalorder %s25, 0
      %p241 = por %p239, %p240
      %s242 = ssub.s32 %s19, %s26
      %p243 = scmp.eq.s32.totalorder %s242, 0
      %s245 = sadd.s32 %s244, 1
      %s246 = scalar_select %p243, %s244, %s245
      %p249 = pneg %p243
      %p250 = scmp.eq.s32.totalorder %s19, 1
      %p251 = por %p249, %p250
      %p252 = scmp.ne.s32.totalorder %s244, %s247
      %p253 = scmp.eq.s32.totalorder %s19, 0
      %p254 = por %p252, %p253
      %p255 = scmp.ne.s32.totalorder %s244, %s247
      %p256 = scmp.eq.s32.totalorder %s24, 1
      %p257 = por %p255, %p256
      %p258 = scmp.ne.s32.totalorder %s247, %s248
      %p259 = scmp.eq.s32.totalorder %s24, 0
      %p260 = por %p258, %p259
      %p261 = scmp.ne.s32.totalorder %s247, %s248
      %p262 = scmp.eq.s32.totalorder %s25, 1
      %p263 = por %p261, %p262
      %p265 = scmp.ne.s32.totalorder %s248, %s264
      %p266 = scmp.eq.s32.totalorder %s25, 0
      %p267 = por %p265, %p266
      %p268 = scmp.le.s32.totalorder 1, %s19
      %p269 = scmp.lt.s32.totalorder %s19, 3
      %p270 = pnand %p268, %p269
      %p271 = pneg %p270
      // Predicated region
      $region9: #{tpu_custom_call.1} parent=5 // pred_check
        _
      $region10: #{tpu_custom_call.1} parent=5 // pred_check_branch
        %273 = sbr.rel (%p270) target = $region12
      $region11: #{tpu_custom_call.1} parent=5 // pred_region
        %s274 = ssub.s32 %s19, 1
        // Predicated region
        $region13: #{tpu_custom_call.1} parent=11 // pred_check
          %p275 = pneg %p66
        $region14: #{tpu_custom_call.1} parent=11 // pred_check_branch
          %277 = sbr.rel (%p275) target = $region16
        $region15: #{tpu_custom_call.1} parent=11 // pred_region
          _
        $region16: #{tpu_custom_call.1} parent=11 // pred_fallthru
          _
        // Predicated region
        $region17: #{tpu_custom_call.1} parent=11 // pred_check
          %p278 = pneg %p87
        $region18: #{tpu_custom_call.1} parent=11 // pred_check_branch
          %280 = sbr.rel (%p278) target = $region20
        $region19: #{tpu_custom_call.1} parent=11 // pred_region
          _
        $region20: #{tpu_custom_call.1} parent=11 // pred_fallthru
          _
        // Predicated region
        $region21: #{tpu_custom_call.1} parent=11 // pred_check
          %p281 = pneg %p108
        $region22: #{tpu_custom_call.1} parent=11 // pred_check_branch
          %283 = sbr.rel (%p281) target = $region24
        $region23: #{tpu_custom_call.1} parent=11 // pred_region
          _
        $region24: #{tpu_custom_call.1} parent=11 // pred_fallthru
          _
        // Predicated region
        $region25: #{tpu_custom_call.1} parent=11 // pred_check
          %p284 = pneg %p129
        $region26: #{tpu_custom_call.1} parent=11 // pred_check_branch
          %286 = sbr.rel (%p284) target = $region28
        $region27: #{tpu_custom_call.1} parent=11 // pred_region
          _
        $region28: #{tpu_custom_call.1} parent=11 // pred_fallthru
          _
        // Predicated region
        $region29: #{tpu_custom_call.1} parent=11 // pred_check
          %p287 = pneg %p150
        $region30: #{tpu_custom_call.1} parent=11 // pred_check_branch
          %289 = sbr.rel (%p287) target = $region32
        $region31: #{tpu_custom_call.1} parent=11 // pred_region
          _
        $region32: #{tpu_custom_call.1} parent=11 // pred_fallthru
          _
        // Predicated region
        $region33: #{tpu_custom_call.1} parent=11 // pred_check
          %p290 = pneg %p171
        $region34: #{tpu_custom_call.1} parent=11 // pred_check_branch
          %292 = sbr.rel (%p290) target = $region36
        $region35: #{tpu_custom_call.1} parent=11 // pred_region
          _
        $region36: #{tpu_custom_call.1} parent=11 // pred_fallthru
          _
        // Predicated region
        $region37: #{tpu_custom_call.1} parent=11 // pred_check
          %p293 = pneg %p192
        $region38: #{tpu_custom_call.1} parent=11 // pred_check_branch
          %295 = sbr.rel (%p293) target = $region40
        $region39: #{tpu_custom_call.1} parent=11 // pred_region
          _
        $region40: #{tpu_custom_call.1} parent=11 // pred_fallthru
          _
        // Predicated region
        $region41: #{tpu_custom_call.1} parent=11 // pred_check
          %p296 = pneg %p213
        $region42: #{tpu_custom_call.1} parent=11 // pred_check_branch
          %298 = sbr.rel (%p296) target = $region44
        $region43: #{tpu_custom_call.1} parent=11 // pred_region
          _
        $region44: #{tpu_custom_call.1} parent=11 // pred_fallthru
          _
        // Predicated region
        $region45: #{tpu_custom_call.1} parent=11 // pred_check
          %p299 = pneg %p234
        $region46: #{tpu_custom_call.1} parent=11 // pred_check_branch
          %301 = sbr.rel (%p299) target = $region48
        $region47: #{tpu_custom_call.1} parent=11 // pred_region
          _
        $region48: #{tpu_custom_call.1} parent=11 // pred_fallthru
          _
      $region12: #{tpu_custom_call.1} parent=5 // pred_fallthru
        _
      %p302 = scmp.lt.s32.totalorder %s19, 2
      // Predicated region
      $region49: #{tpu_custom_call.1} parent=5 // pred_check
        %p303 = pneg %p302
      $region50: #{tpu_custom_call.1} parent=5 // pred_check_branch
        %305 = sbr.rel (%p303) target = $region52
      $region51: #{tpu_custom_call.1} parent=5 // pred_region
        // Predicated region
        $region53: #{tpu_custom_call.1} parent=51 // pred_check
          %p306 = pneg %p39
        $region54: #{tpu_custom_call.1} parent=51 // pred_check_branch
          %308 = sbr.rel (%p306) target = $region56
        $region55: #{tpu_custom_call.1} parent=51 // pred_region
          %p309 = scmp.lt.s32.totalorder %s19, 1
          %s310 = scalar_select %p309, %s19, 1
          %s311 = smul.addr %s310, 2
          %s312 = smul.addr %s311, 4
          %s313 = scalar_lea.vmem %s0, %s312
        $region56: #{tpu_custom_call.1} parent=51 // pred_fallthru
          _
      $region52: #{tpu_custom_call.1} parent=5 // pred_fallthru
        _
      %p314 = scmp.le.s32.totalorder 1, %s19
      %p315 = scmp.lt.s32.totalorder %s19, 3
      %p316 = pnand %p314, %p315
      %p317 = pneg %p316
      // Predicated region
      $region57: #{tpu_custom_call.1} parent=5 // pred_check
        _
      $region58: #{tpu_custom_call.1} parent=5 // pred_check_branch
        %319 = sbr.rel (%p316) target = $region60
      $region59: #{tpu_custom_call.1} parent=5 // pred_region
        %s320 = ssub.s32 %s19, 1
        %p321 = scmp.lt.s32.totalorder %s24, 1
        %s322 = scalar_select %p321, %s24, 1
        %s323 = smul.addr %s322, 2
        %s324 = smul.addr %s323, 4
        %s325 = scalar_lea.vmem %s0, %s324
        %p326 = pneg %p45
        %p327 = pneg %p42
        %p328 = pneg %p66
        %p329 = pneg %p63
        %p330 = pneg %p87
        %p331 = pneg %p84
        %p332 = pneg %p108
        %p333 = pneg %p105
        %p334 = pneg %p129
        %p335 = pneg %p126
        %p336 = pneg %p150
        %p337 = pneg %p147
        %p338 = pneg %p171
        %p339 = pneg %p168
        %p340 = pneg %p192
        %p341 = pneg %p189
        %p342 = pneg %p213
        %p343 = pneg %p210
        %p344 = pneg %p234
        %p345 = pneg %p231
        %p346 = pneg %p260
        %p347 = pneg %p257
        %s348 = sand.u32 %s247, 1
        %s349 = scalar_lea.sflag [#allocation4], %s348
        %s350 = sand.u32 %s247, 1
        %s351 = smul.addr %s350, 8
        %s352 = scalar_lea.vmem [#allocation3], %s351
        %p353 = scmp.lt.s32.totalorder %s24, 1
        %s354 = scalar_select %p353, %s24, 1
        %s355 = smul.addr %s354, 2
        %s356 = smul.addr %s355, 4
        %s357 = scalar_lea.vmem %s0, %s356
        %v358 = vld [vmem:[%s357] sm:$0xff]
        %v359 = vld [vmem:[%s1] sm:$0xff]
        %v360 = vld [vmem:[%s1 + $0x8] sm:$0xf]
        %362 = vset.pattern.permute.xlu0 0
        %363 = vperm.xlu0 %362, %v359
        %v364 = vpop.permute.xlu0 %363
        %367 = vset.pattern.permute.xlu0 0
        %368 = vperm.xlu0 %367, %v360
        %v369 = vpop.permute.xlu0 %368
        %v372 = vperm.slane %v358, 0
        %v373 = vperm.slane %v358, 4
        %v376 = vperm.slane %v372, 0
        %v377 = vperm.slane %v373, 0
        %v378 = vmul.f32 %v364, %v376
        %v379 = vmul.f32 %v364, %v377
        %v380 = vmul.f32 %v369, %v376
        %v381 = vmul.f32 %v369, %v377
        %382 = vset.pattern.permute.xlu0 1
        %383 = vperm.xlu0 %382, %v359
        %v384 = vpop.permute.xlu0 %383
        %386 = vset.pattern.permute.xlu0 1
        %387 = vperm.xlu0 %386, %v360
        %v388 = vpop.permute.xlu0 %387
        %v390 = vperm.slane %v358, 1
        %v391 = vperm.slane %v358, 5
        %v394 = vperm.slane %v390, 1
        %v395 = vperm.slane %v391, 1
        %v396 = vmul.f32 %v384, %v394
        %v397 = vmul.f32 %v384, %v395
        %v398 = vmul.f32 %v388, %v394
        %v399 = vmul.f32 %v388, %v395
        %v400 = vadd.f32 %v378, %v396
        %v401 = vadd.f32 %v379, %v397
        %v402 = vadd.f32 %v380, %v398
        %v403 = vadd.f32 %v381, %v399
        %404 = vset.pattern.permute.xlu0 2
        %405 = vperm.xlu0 %404, %v359
        %v406 = vpop.permute.xlu0 %405
        %408 = vset.pattern.permute.xlu0 2
        %409 = vperm.xlu0 %408, %v360
        %v410 = vpop.permute.xlu0 %409
        %v412 = vperm.slane %v358, 2
        %v413 = vperm.slane %v358, 6
        %v416 = vperm.slane %v412, 2
        %v417 = vperm.slane %v413, 2
        %v418 = vmul.f32 %v406, %v416
        %v419 = vmul.f32 %v406, %v417
        %v420 = vmul.f32 %v410, %v416
        %v421 = vmul.f32 %v410, %v417
        %v422 = vadd.f32 %v400, %v418
        %v423 = vadd.f32 %v401, %v419
        %v424 = vadd.f32 %v402, %v420
        %v425 = vadd.f32 %v403, %v421
        %426 = vset.pattern.permute.xlu0 3
        %427 = vperm.xlu0 %426, %v359
        %v428 = vpop.permute.xlu0 %427
        %430 = vset.pattern.permute.xlu0 3
        %431 = vperm.xlu0 %430, %v360
        %v432 = vpop.permute.xlu0 %431
        %v434 = vperm.slane %v358, 3
        %v435 = vperm.slane %v358, 7
        %v438 = vperm.slane %v434, 3
        %v439 = vperm.slane %v435, 3
        %v440 = vmul.f32 %v428, %v438
        %v441 = vmul.f32 %v428, %v439
        %v442 = vmul.f32 %v432, %v438
        %v443 = vmul.f32 %v432, %v439
        %v444 = vadd.f32 %v422, %v440
        %v445 = vadd.f32 %v423, %v441
        %v446 = vadd.f32 %v424, %v442
        %v447 = vadd.f32 %v425, %v443
        %v448 = vld [vmem:[%s2] sm:$0xff]
        %v449 = vld [vmem:[%s2 + $0x8] sm:$0xf]
        %451 = vset.pattern.permute.xlu0 0
        %452 = vperm.xlu0 %451, %v448
        %v453 = vpop.permute.xlu0 %452
        %456 = vset.pattern.permute.xlu0 0
        %457 = vperm.xlu0 %456, %v449
        %v458 = vpop.permute.xlu0 %457
        %v460 = vmul.f32 %v444, %v453
        %v461 = vmul.f32 %v445, %v453
        %v462 = vmul.f32 %v446, %v458
        %v463 = vmul.f32 %v447, %v458
        %v464 = vld [vmem:[%s3] sm:$0xff]
        %v465 = vld [vmem:[%s3 + $0x8] sm:$0xf]
        %467 = vset.pattern.permute.xlu0 0
        %468 = vperm.xlu0 %467, %v464
        %v469 = vpop.permute.xlu0 %468
        %472 = vset.pattern.permute.xlu0 0
        %473 = vperm.xlu0 %472, %v465
        %v474 = vpop.permute.xlu0 %473
        %v476 = vadd.f32 %v460, %v469
        %v477 = vadd.f32 %v461, %v469
        %v478 = vadd.f32 %v462, %v474
        %v479 = vadd.f32 %v463, %v474
        %v480 = vmax.f32 %v476, 0.0
        %v481 = vmax.f32 %v477, 0.0
        %v482 = vmax.f32 %v478, 0.0
        %v483 = vmax.f32 %v479, 0.0
        %v484 = vmin.f32 %v480, 6.0
        %v485 = vmin.f32 %v481, 6.0
        %v486 = vmin.f32 %v482, 6.0
        %v487 = vmin.f32 %v483, 6.0
        %488 = vst [vmem:[#allocation2] sm:$0xff] 0.0
        %489 = vst [vmem:[#allocation2 + $0x20] sm:$0xf] 0.0
        %490 = vst [vmem:[#allocation2 + $0x18] sm:$0xff] 0.0
        %491 = vst [vmem:[#allocation2 + $0x38] sm:$0xf] 0.0
        %492 = vst [vmem:[#allocation2 + $0x8] sm:$0xff] %v484
        %493 = vst [vmem:[#allocation2 + $0x10] sm:$0xff] %v485
        %494 = vst [vmem:[#allocation2 + $0x28] sm:$0xf] %v486
        %495 = vst [vmem:[#allocation2 + $0x30] sm:$0xf] %v487
        %v496 = vlaneseq
        %v497 = vand.u32 %v496, 127
        %v498 = vadd.s32 %v497, 128
        %vm499 = vcmp.lt.s32.totalorder %v497, 0
        %v500 = vsub.s32 0, %v497
        %v501 = vsel %vm499, %v500, %v497
        %v502 = vshrl.u32 %v501, 4
        %v503 = vand.u32 %v501, 15
        %v504 = vsub.s32 0, %v503
        %v505 = vsel %vm499, %v504, %v503
        %vm506 = vcmp.lt.s32.totalorder %v498, 0
        %v507 = vsub.s32 0, %v498
        %v508 = vsel %vm506, %v507, %v498
        %v509 = vshrl.u32 %v508, 4
        %v510 = vand.u32 %v508, 15
        %v511 = vsub.s32 0, %v510
        %v512 = vsel %vm506, %v511, %v510
        %vm513 = vcmp.ne.s32.totalorder %v505, 0
        %vm514 = vcmp.ne.s32.totalorder %v512, 0
        %vm515 = vcmp.lt.s32.totalorder %v505, 0
        %vm516 = vcmp.lt.s32.totalorder %v512, 0
        %vm517 = vmand %vm515, %vm513
        %vm518 = vmand %vm516, %vm514
        %v519 = vadd.s32 %v505, 16
        %v520 = vadd.s32 %v512, 16
        %v521 = vsel %vm517, %v519, %v505
        %v522 = vsel %vm518, %v520, %v512
        %v523 = vadd.s32 %v521, 4294967295
        %v524 = vadd.s32 %v522, 4294967295
        %vm525 = vcmp.ge.s32.totalorder %v523, 0
        %vm526 = vcmp.ge.s32.totalorder %v524, 0
        %vm527 = vcmp.lt.s32.totalorder %v523, 16
        %vm528 = vcmp.lt.s32.totalorder %v524, 16
        %vm529 = vmand %vm525, %vm527
        %vm530 = vmand %vm526, %vm528
        %v531 = vadd.s32 %v521, 1
        %v532 = vadd.s32 %v522, 1
        %vm533 = vcmp.ge.s32.totalorder %v531, 0
        %vm534 = vcmp.ge.s32.totalorder %v532, 0
        %vm535 = vcmp.lt.s32.totalorder %v531, 16
        %vm536 = vcmp.lt.s32.totalorder %v532, 16
        %vm537 = vmand %vm533, %vm535
        %vm538 = vmand %vm534, %vm536
        %v539 = vld [vmem:[%s4] sm:$0xff]
        %v540 = vld [vmem:[%s4 + $0x8] sm:$0xf]
        %v541 = vld [vmem:[#allocation2] sm:$0xff]
        %v542 = vld [vmem:[#allocation2 + $0x8] sm:$0xff]
        %v543 = vld [vmem:[#allocation2 + $0x10] sm:$0xff]
        %v544 = vld [vmem:[#allocation2 + $0x20] sm:$0xf]
        %v545 = vld [vmem:[#allocation2 + $0x28] sm:$0xf]
        %v546 = vld [vmem:[#allocation2 + $0x30] sm:$0xf]
        %v547 = vsel %vm529, 1, 0
        %v548 = vsel %vm530, 1, 0
        %vm549 = vcmp.eq.s32.totalorder %v547, 1
        %vm550 = vcmp.eq.s32.totalorder %v548, 1
        %557 = vrot.lane.b32.xlu0 %v541, 17
        %v558 = vpop.permute.xlu0 %557
        %559 = vrot.lane.b32.xlu0 %v542, 17
        %v560 = vpop.permute.xlu0 %559
        %561 = vrot.lane.b32.xlu0 %v543, 17
        %v562 = vpop.permute.xlu0 %561
        %563 = vrot.lane.b32.xlu0 %v544, 17
        %v564 = vpop.permute.xlu0 %563
        %565 = vrot.lane.b32.xlu0 %v545, 17
        %v566 = vpop.permute.xlu0 %565
        %567 = vrot.lane.b32.xlu0 %v546, 17
        %v568 = vpop.permute.xlu0 %567
        %vm569 = vcmask 138240
        %v570 = vsel %vm569, %v558, %v560
        %v571 = vsel %vm569, %v560, %v562
        %v572 = vsel %vm569, %v564, %v566
        %v573 = vsel %vm569, %v566, %v568
        %v578 = vsel %vm549, %v570, 0.0
        %v579 = vsel %vm550, %v571, 0.0
        %v580 = vsel %vm549, %v572, 0.0
        %v581 = vsel %vm550, %v573, 0.0
        %583 = vset.pattern.permute.xlu0 0
        %584 = vperm.xlu0 %583, %v539
        %v585 = vpop.permute.xlu0 %584
        %588 = vset.pattern.permute.xlu0 0
        %589 = vperm.xlu0 %588, %v540
        %v590 = vpop.permute.xlu0 %589
        %v592 = vmul.f32 %v578, %v585
        %v593 = vmul.f32 %v579, %v585
        %v594 = vmul.f32 %v580, %v590
        %v595 = vmul.f32 %v581, %v590
        %v596 = vadd.f32 %v592, 0.0
        %v597 = vadd.f32 %v593, 0.0
        %v598 = vadd.f32 %v594, 0.0
        %v599 = vadd.f32 %v595, 0.0
        %600 = vset.pattern.permute.xlu0 1
        %601 = vperm.xlu0 %600, %v539
        %v602 = vpop.permute.xlu0 %601
        %604 = vset.pattern.permute.xlu0 1
        %605 = vperm.xlu0 %604, %v540
        %v606 = vpop.permute.xlu0 %605
        %v608 = vmul.f32 %v541, %v602
        %v609 = vmul.f32 %v542, %v602
        %v610 = vmul.f32 %v543, %v602
        %v611 = vmul.f32 %v544, %v606
        %v612 = vmul.f32 %v545, %v606
        %v613 = vmul.f32 %v546, %v606
        %620 = vrot.lane.b32.xlu0 %v608, 16
        %v621 = vpop.permute.xlu0 %620
        %622 = vrot.lane.b32.xlu0 %v609, 16
        %v623 = vpop.permute.xlu0 %622
        %624 = vrot.lane.b32.xlu0 %v610, 16
        %v625 = vpop.permute.xlu0 %624
        %626 = vrot.lane.b32.xlu0 %v611, 16
        %v627 = vpop.permute.xlu0 %626
        %628 = vrot.lane.b32.xlu0 %v612, 16
        %v629 = vpop.permute.xlu0 %628
        %630 = vrot.lane.b32.xlu0 %v613, 16
        %v631 = vpop.permute.xlu0 %630
        %vm632 = vcmask 130048
        %v633 = vsel %vm632, %v621, %v623
        %v634 = vsel %vm632, %v623, %v625
        %v635 = vsel %vm632, %v627, %v629
        %v636 = vsel %vm632, %v629, %v631
        %v641 = vadd.f32 %v596, %v633
        %v642 = vadd.f32 %v597, %v634
        %v643 = vadd.f32 %v598, %v635
        %v644 = vadd.f32 %v599, %v636
        %v645 = vsel %vm537, 1, 0
        %v646 = vsel %vm538, 1, 0
        %vm647 = vcmp.eq.s32.totalorder %v645, 1
        %vm648 = vcmp.eq.s32.totalorder %v646, 1
        %649 = vrot.lane.b32.xlu0 %v541, 15
        %v650 = vpop.permute.xlu0 %649
        %651 = vrot.lane.b32.xlu0 %v542, 15
        %v652 = vpop.permute.xlu0 %651
        %653 = vrot.lane.b32.xlu0 %v543, 15
        %v654 = vpop.permute.xlu0 %653
        %655 = vrot.lane.b32.xlu0 %v544, 15
        %v656 = vpop.permute.xlu0 %655
        %657 = vrot.lane.b32.xlu0 %v545, 15
        %v658 = vpop.permute.xlu0 %657
        %659 = vrot.lane.b32.xlu0 %v546, 15
        %v660 = vpop.permute.xlu0 %659
        %vm661 = vcmask 121856
        %v662 = vsel %vm661, %v650, %v652
        %v663 = vsel %vm661, %v652, %v654
        %v664 = vsel %vm661, %v656, %v658
        %v665 = vsel %vm661, %v658, %v660
        %v670 = vsel %vm647, %v662, 0.0
        %v671 = vsel %vm648, %v663, 0.0
        %v672 = vsel %vm647, %v664, 0.0
        %v673 = vsel %vm648, %v665, 0.0
        %674 = vset.pattern.permute.xlu0 2
        %675 = vperm.xlu0 %674, %v539
        %v676 = vpop.permute.xlu0 %675
        %678 = vset.pattern.permute.xlu0 2
        %679 = vperm.xlu0 %678, %v540
        %v680 = vpop.permute.xlu0 %679
        %v682 = vmul.f32 %v670, %v676
        %v683 = vmul.f32 %v671, %v676
        %v684 = vmul.f32 %v672, %v680
        %v685 = vmul.f32 %v673, %v680
        %v686 = vadd.f32 %v641, %v682
        %v687 = vadd.f32 %v642, %v683
        %v688 = vadd.f32 %v643, %v684
        %v689 = vadd.f32 %v644, %v685
        %690 = vrot.lane.b32.xlu0 %v541, 1
        %v691 = vpop.permute.xlu0 %690
        %692 = vrot.lane.b32.xlu0 %v542, 1
        %v693 = vpop.permute.xlu0 %692
        %694 = vrot.lane.b32.xlu0 %v543, 1
        %v695 = vpop.permute.xlu0 %694
        %696 = vrot.lane.b32.xlu0 %v544, 1
        %v697 = vpop.permute.xlu0 %696
        %698 = vrot.lane.b32.xlu0 %v545, 1
        %v699 = vpop.permute.xlu0 %698
        %700 = vrot.lane.b32.xlu0 %v546, 1
        %v701 = vpop.permute.xlu0 %700
        %vm702 = vcmask 7168
        %v703 = vsel %vm702, %v691, %v693
        %v704 = vsel %vm702, %v693, %v695
        %v705 = vsel %vm702, %v697, %v699
        %v706 = vsel %vm702, %v699, %v701
        %v711 = vsel %vm549, %v703, 0.0
        %v712 = vsel %vm550, %v704, 0.0
        %v713 = vsel %vm549, %v705, 0.0
        %v714 = vsel %vm550, %v706, 0.0
        %715 = vset.pattern.permute.xlu0 3
        %716 = vperm.xlu0 %715, %v539
        %v717 = vpop.permute.xlu0 %716
        %719 = vset.pattern.permute.xlu0 3
        %720 = vperm.xlu0 %719, %v540
        %v721 = vpop.permute.xlu0 %720
        %v723 = vmul.f32 %v711, %v717
        %v724 = vmul.f32 %v712, %v717
        %v725 = vmul.f32 %v713, %v721
        %v726 = vmul.f32 %v714, %v721
        %v727 = vadd.f32 %v686, %v723
        %v728 = vadd.f32 %v687, %v724
        %v729 = vadd.f32 %v688, %v725
        %v730 = vadd.f32 %v689, %v726
        %731 = vset.pattern.permute.xlu0 4
        %732 = vperm.xlu0 %731, %v539
        %v733 = vpop.permute.xlu0 %732
        %735 = vset.pattern.permute.xlu0 4
        %736 = vperm.xlu0 %735, %v540
        %v737 = vpop.permute.xlu0 %736
        %v739 = vmul.f32 %v542, %v733
        %v740 = vmul.f32 %v543, %v733
        %v741 = vmul.f32 %v545, %v737
        %v742 = vmul.f32 %v546, %v737
        %v743 = vadd.f32 %v727, %v739
        %v744 = vadd.f32 %v728, %v740
        %v745 = vadd.f32 %v729, %v741
        %v746 = vadd.f32 %v730, %v742
        %v747 = vld [vmem:[#allocation2 + $0x8] sm:$0xff]
        %v748 = vld [vmem:[#allocation2 + $0x10] sm:$0xff]
        %v749 = vld [vmem:[#allocation2 + $0x18] sm:$0xff]
        %v750 = vld [vmem:[#allocation2 + $0x28] sm:$0xf]
        %v751 = vld [vmem:[#allocation2 + $0x30] sm:$0xf]
        %v752 = vld [vmem:[#allocation2 + $0x38] sm:$0xf]
        %759 = vrot.lane.b32.xlu0 %v747, 127
        %v760 = vpop.permute.xlu0 %759
        %761 = vrot.lane.b32.xlu0 %v748, 127
        %v762 = vpop.permute.xlu0 %761
        %763 = vrot.lane.b32.xlu0 %v749, 127
        %v764 = vpop.permute.xlu0 %763
        %765 = vrot.lane.b32.xlu0 %v750, 127
        %v766 = vpop.permute.xlu0 %765
        %767 = vrot.lane.b32.xlu0 %v751, 127
        %v768 = vpop.permute.xlu0 %767
        %769 = vrot.lane.b32.xlu0 %v752, 127
        %v770 = vpop.permute.xlu0 %769
        %vm771 = vcmask 1039360
        %v772 = vsel %vm771, %v760, %v762
        %v773 = vsel %vm771, %v762, %v764
        %v774 = vsel %vm771, %v766, %v768
        %v775 = vsel %vm771, %v768, %v770
        %v780 = vsel %vm647, %v772, 0.0
        %v781 = vsel %vm648, %v773, 0.0
        %v782 = vsel %vm647, %v774, 0.0
        %v783 = vsel %vm648, %v775, 0.0
        %784 = vset.pattern.permute.xlu0 5
        %785 = vperm.xlu0 %784, %v539
        %v786 = vpop.permute.xlu0 %785
        %788 = vset.pattern.permute.xlu0 5
        %789 = vperm.xlu0 %788, %v540
        %v790 = vpop.permute.xlu0 %789
        %v792 = vmul.f32 %v780, %v786
        %v793 = vmul.f32 %v781, %v786
        %v794 = vmul.f32 %v782, %v790
        %v795 = vmul.f32 %v783, %v790
        %v796 = vadd.f32 %v743, %v792
        %v797 = vadd.f32 %v744, %v793
        %v798 = vadd.f32 %v745, %v794
        %v799 = vadd.f32 %v746, %v795
        %800 = vrot.lane.b32.xlu0 %v747, 113
        %v801 = vpop.permute.xlu0 %800
        %802 = vrot.lane.b32.xlu0 %v748, 113
        %v803 = vpop.permute.xlu0 %802
        %804 = vrot.lane.b32.xlu0 %v749, 113
        %v805 = vpop.permute.xlu0 %804
        %806 = vrot.lane.b32.xlu0 %v750, 113
        %v807 = vpop.permute.xlu0 %806
        %808 = vrot.lane.b32.xlu0 %v751, 113
        %v809 = vpop.permute.xlu0 %808
        %810 = vrot.lane.b32.xlu0 %v752, 113
        %v811 = vpop.permute.xlu0 %810
        %vm812 = vcmask 924672
        %v813 = vsel %vm812, %v801, %v803
        %v814 = vsel %vm812, %v803, %v805
        %v815 = vsel %vm812, %v807, %v809
        %v816 = vsel %vm812, %v809, %v811
        %v821 = vsel %vm549, %v813, 0.0
        %v822 = vsel %vm550, %v814, 0.0
        %v823 = vsel %vm549, %v815, 0.0
        %v824 = vsel %vm550, %v816, 0.0
        %825 = vset.pattern.permute.xlu0 6
        %826 = vperm.xlu0 %825, %v539
        %v827 = vpop.permute.xlu0 %826
        %829 = vset.pattern.permute.xlu0 6
        %830 = vperm.xlu0 %829, %v540
        %v831 = vpop.permute.xlu0 %830
        %v833 = vmul.f32 %v821, %v827
        %v834 = vmul.f32 %v822, %v827
        %v835 = vmul.f32 %v823, %v831
        %v836 = vmul.f32 %v824, %v831
        %v837 = vadd.f32 %v796, %v833
        %v838 = vadd.f32 %v797, %v834
        %v839 = vadd.f32 %v798, %v835
        %v840 = vadd.f32 %v799, %v836
        %841 = vset.pattern.permute.xlu0 7
        %842 = vperm.xlu0 %841, %v539
        %v843 = vpop.permute.xlu0 %842
        %845 = vset.pattern.permute.xlu0 7
        %846 = vperm.xlu0 %845, %v540
        %v847 = vpop.permute.xlu0 %846
        %v849 = vmul.f32 %v747, %v843
        %v850 = vmul.f32 %v748, %v843
        %v851 = vmul.f32 %v749, %v843
        %v852 = vmul.f32 %v750, %v847
        %v853 = vmul.f32 %v751, %v847
        %v854 = vmul.f32 %v752, %v847
        %861 = vrot.lane.b32.xlu0 %v849, 112
        %v862 = vpop.permute.xlu0 %861
        %863 = vrot.lane.b32.xlu0 %v850, 112
        %v864 = vpop.permute.xlu0 %863
        %865 = vrot.lane.b32.xlu0 %v851, 112
        %v866 = vpop.permute.xlu0 %865
        %867 = vrot.lane.b32.xlu0 %v852, 112
        %v868 = vpop.permute.xlu0 %867
        %869 = vrot.lane.b32.xlu0 %v853, 112
        %v870 = vpop.permute.xlu0 %869
        %871 = vrot.lane.b32.xlu0 %v854, 112
        %v872 = vpop.permute.xlu0 %871
        %vm873 = vcmask 916480
        %v874 = vsel %vm873, %v862, %v864
        %v875 = vsel %vm873, %v864, %v866
        %v876 = vsel %vm873, %v868, %v870
        %v877 = vsel %vm873, %v870, %v872
        %v882 = vadd.f32 %v837, %v874
        %v883 = vadd.f32 %v838, %v875
        %v884 = vadd.f32 %v839, %v876
        %v885 = vadd.f32 %v840, %v877
        %886 = vrot.lane.b32.xlu0 %v747, 111
        %v887 = vpop.permute.xlu0 %886
        %888 = vrot.lane.b32.xlu0 %v748, 111
        %v889 = vpop.permute.xlu0 %888
        %890 = vrot.lane.b32.xlu0 %v749, 111
        %v891 = vpop.permute.xlu0 %890
        %892 = vrot.lane.b32.xlu0 %v750, 111
        %v893 = vpop.permute.xlu0 %892
        %894 = vrot.lane.b32.xlu0 %v751, 111
        %v895 = vpop.permute.xlu0 %894
        %896 = vrot.lane.b32.xlu0 %v752, 111
        %v897 = vpop.permute.xlu0 %896
        %vm898 = vcmask 908288
        %v899 = vsel %vm898, %v887, %v889
        %v900 = vsel %vm898, %v889, %v891
        %v901 = vsel %vm898, %v893, %v895
        %v902 = vsel %vm898, %v895, %v897
        %v907 = vsel %vm647, %v899, 0.0
        %v908 = vsel %vm648, %v900, 0.0
        %v909 = vsel %vm647, %v901, 0.0
        %v910 = vsel %vm648, %v902, 0.0
        %911 = vset.pattern.permute.xlu0 8
        %912 = vperm.xlu0 %911, %v539
        %v913 = vpop.permute.xlu0 %912
        %915 = vset.pattern.permute.xlu0 8
        %916 = vperm.xlu0 %915, %v540
        %v917 = vpop.permute.xlu0 %916
        %v919 = vmul.f32 %v907, %v913
        %v920 = vmul.f32 %v908, %v913
        %v921 = vmul.f32 %v909, %v917
        %v922 = vmul.f32 %v910, %v917
        %v923 = vadd.f32 %v882, %v919
        %v924 = vadd.f32 %v883, %v920
        %v925 = vadd.f32 %v884, %v921
        %v926 = vadd.f32 %v885, %v922
        %v927 = vld [vmem:[%s5] sm:$0xff]
        %v928 = vld [vmem:[%s5 + $0x8] sm:$0xf]
        %930 = vset.pattern.permute.xlu0 0
        %931 = vperm.xlu0 %930, %v927
        %v932 = vpop.permute.xlu0 %931
        %935 = vset.pattern.permute.xlu0 0
        %936 = vperm.xlu0 %935, %v928
        %v937 = vpop.permute.xlu0 %936
        %v939 = vmul.f32 %v923, %v932
        %v940 = vmul.f32 %v924, %v932
        %v941 = vmul.f32 %v925, %v937
        %v942 = vmul.f32 %v926, %v937
        %v943 = vld [vmem:[%s6] sm:$0xff]
        %v944 = vld [vmem:[%s6 + $0x8] sm:$0xf]
        %946 = vset.pattern.permute.xlu0 0
        %947 = vperm.xlu0 %946, %v943
        %v948 = vpop.permute.xlu0 %947
        %951 = vset.pattern.permute.xlu0 0
        %952 = vperm.xlu0 %951, %v944
        %v953 = vpop.permute.xlu0 %952
        %v955 = vadd.f32 %v939, %v948
        %v956 = vadd.f32 %v940, %v948
        %v957 = vadd.f32 %v941, %v953
        %v958 = vadd.f32 %v942, %v953
        %v959 = vmax.f32 %v955, 0.0
        %v960 = vmax.f32 %v956, 0.0
        %v961 = vmax.f32 %v957, 0.0
        %v962 = vmax.f32 %v958, 0.0
        %v963 = vmin.f32 %v959, 6.0
        %v964 = vmin.f32 %v960, 6.0
        %v965 = vmin.f32 %v961, 6.0
        %v966 = vmin.f32 %v962, 6.0
        %v967 = vld [vmem:[%s7] sm:$0xf]
        %969 = vset.pattern.permute.xlu0 0
        %970 = vperm.xlu0 %969, %v967
        %v971 = vpop.permute.xlu0 %970
        %v973 = vperm.slane %v963, 0
        %v974 = vperm.slane %v964, 0
        %v975 = vmul.f32 %v971, %v973
        %v976 = vmul.f32 %v971, %v974
        %977 = vset.pattern.permute.xlu0 1
        %978 = vperm.xlu0 %977, %v967
        %v979 = vpop.permute.xlu0 %978
        %v981 = vperm.slane %v963, 1
        %v982 = vperm.slane %v964, 1
        %v983 = vmul.f32 %v979, %v981
        %v984 = vmul.f32 %v979, %v982
        %v985 = vadd.f32 %v975, %v983
        %v986 = vadd.f32 %v976, %v984
        %987 = vset.pattern.permute.xlu0 2
        %988 = vperm.xlu0 %987, %v967
        %v989 = vpop.permute.xlu0 %988
        %v991 = vperm.slane %v963, 2
        %v992 = vperm.slane %v964, 2
        %v993 = vmul.f32 %v989, %v991
        %v994 = vmul.f32 %v989, %v992
        %v995 = vadd.f32 %v985, %v993
        %v996 = vadd.f32 %v986, %v994
        %997 = vset.pattern.permute.xlu0 3
        %998 = vperm.xlu0 %997, %v967
        %v999 = vpop.permute.xlu0 %998
        %v1001 = vperm.slane %v963, 3
        %v1002 = vperm.slane %v964, 3
        %v1003 = vmul.f32 %v999, %v1001
        %v1004 = vmul.f32 %v999, %v1002
        %v1005 = vadd.f32 %v995, %v1003
        %v1006 = vadd.f32 %v996, %v1004
        %1007 = vset.pattern.permute.xlu0 4
        %1008 = vperm.xlu0 %1007, %v967
        %v1009 = vpop.permute.xlu0 %1008
        %v1011 = vperm.slane %v963, 4
        %v1012 = vperm.slane %v964, 4
        %v1013 = vmul.f32 %v1009, %v1011
        %v1014 = vmul.f32 %v1009, %v1012
        %v1015 = vadd.f32 %v1005, %v1013
        %v1016 = vadd.f32 %v1006, %v1014
        %1017 = vset.pattern.permute.xlu0 5
        %1018 = vperm.xlu0 %1017, %v967
        %v1019 = vpop.permute.xlu0 %1018
        %v1021 = vperm.slane %v963, 5
        %v1022 = vperm.slane %v964, 5
        %v1023 = vmul.f32 %v1019, %v1021
        %v1024 = vmul.f32 %v1019, %v1022
        %v1025 = vadd.f32 %v1015, %v1023
        %v1026 = vadd.f32 %v1016, %v1024
        %1027 = vset.pattern.permute.xlu0 6
        %1028 = vperm.xlu0 %1027, %v967
        %v1029 = vpop.permute.xlu0 %1028
        %v1031 = vperm.slane %v963, 6
        %v1032 = vperm.slane %v964, 6
        %v1033 = vmul.f32 %v1029, %v1031
        %v1034 = vmul.f32 %v1029, %v1032
        %v1035 = vadd.f32 %v1025, %v1033
        %v1036 = vadd.f32 %v1026, %v1034
        %1037 = vset.pattern.permute.xlu0 7
        %1038 = vperm.xlu0 %1037, %v967
        %v1039 = vpop.permute.xlu0 %1038
        %v1041 = vperm.slane %v963, 7
        %v1042 = vperm.slane %v964, 7
        %v1043 = vmul.f32 %v1039, %v1041
        %v1044 = vmul.f32 %v1039, %v1042
        %v1045 = vadd.f32 %v1035, %v1043
        %v1046 = vadd.f32 %v1036, %v1044
        %1047 = vset.pattern.permute.xlu0 8
        %1048 = vperm.xlu0 %1047, %v967
        %v1049 = vpop.permute.xlu0 %1048
        %v1051 = vperm.slane %v965, 0
        %v1052 = vperm.slane %v966, 0
        %v1053 = vmul.f32 %v1049, %v1051
        %v1054 = vmul.f32 %v1049, %v1052
        %v1055 = vadd.f32 %v1045, %v1053
        %v1056 = vadd.f32 %v1046, %v1054
        %1057 = vset.pattern.permute.xlu0 9
        %1058 = vperm.xlu0 %1057, %v967
        %v1059 = vpop.permute.xlu0 %1058
        %v1061 = vperm.slane %v965, 1
        %v1062 = vperm.slane %v966, 1
        %v1063 = vmul.f32 %v1059, %v1061
        %v1064 = vmul.f32 %v1059, %v1062
        %v1065 = vadd.f32 %v1055, %v1063
        %v1066 = vadd.f32 %v1056, %v1064
        %1067 = vset.pattern.permute.xlu0 10
        %1068 = vperm.xlu0 %1067, %v967
        %v1069 = vpop.permute.xlu0 %1068
        %v1071 = vperm.slane %v965, 2
        %v1072 = vperm.slane %v966, 2
        %v1073 = vmul.f32 %v1069, %v1071
        %v1074 = vmul.f32 %v1069, %v1072
        %v1075 = vadd.f32 %v1065, %v1073
        %v1076 = vadd.f32 %v1066, %v1074
        %1077 = vset.pattern.permute.xlu0 11
        %1078 = vperm.xlu0 %1077, %v967
        %v1079 = vpop.permute.xlu0 %1078
        %v1081 = vperm.slane %v965, 3
        %v1082 = vperm.slane %v966, 3
        %v1083 = vmul.f32 %v1079, %v1081
        %v1084 = vmul.f32 %v1079, %v1082
        %v1085 = vadd.f32 %v1075, %v1083
        %v1086 = vadd.f32 %v1076, %v1084
        %v1087 = vld [vmem:[%s8] sm:$0xf]
        %1089 = vset.pattern.permute.xlu0 0
        %1090 = vperm.xlu0 %1089, %v1087
        %v1091 = vpop.permute.xlu0 %1090
        %v1093 = vmul.f32 %v1085, %v1091
        %v1094 = vmul.f32 %v1086, %v1091
        %v1095 = vld [vmem:[%s9] sm:$0xf]
        %1097 = vset.pattern.permute.xlu0 0
        %1098 = vperm.xlu0 %1097, %v1095
        %v1099 = vpop.permute.xlu0 %1098
        %v1101 = vadd.f32 %v1093, %v1099
        %v1102 = vadd.f32 %v1094, %v1099
        %1103 = vst [vmem:[#allocation1] ss:$2 sm:$0xff] %v358
        %v1104 = vld.sshfl [vmem:[#allocation1] sm:$0xff pattern:$0x75316420]
        %v1105 = vld.sshfl [vmem:[#allocation1 + $0x8] sm:$0xff pattern:$0x75316420]
        %v1108 = vadd.f32 %v1101, %v1104
        %v1109 = vadd.f32 %v1102, %v1105
        %v1112 = vrot.slane %v1109, 4
        %vm1113 = vcmask 1043456
        %v1114 = vsel %vm1113, %v1108, %v1112
        %1116 = vst [vmem:[%s352] sm:$0xff] %v1114
        %s1117 = sand.u32 %s247, 1
        %s1118 = scalar_lea.sflag [#allocation4], %s1117
        %s1119 = sand.u32 %s247, 1
        %s1120 = smul.addr %s1119, 8
        %s1121 = scalar_lea.vmem [#allocation3], %s1120
        // Predicated region
        $region61: #{tpu_custom_call.1} parent=59 // pred_check
          %p1122 = pneg %p257
        $region62: #{tpu_custom_call.1} parent=59 // pred_check_branch
          %1124 = sbr.rel (%p1122) target = $region64
        $region63: #{tpu_custom_call.1} parent=59 // pred_region
          %1126 = vsyncadd %s1118, 0
          %s1127 = smul.addr %s24, 2
          %s1128 = smul.addr %s1127, 4
          %s1129 = scalar_lea.hbm %s10, %s1128
          %s1131 = sshll.u32 %s1121, 4
          %s1132 = int_to_ptr.vmem [resolvable:$true] %s1131
          %s1133 = sshll.u32 %s1129, 4
          %s1134 = int_to_ptr.hbm [resolvable:$true] %s1133
          %1136 = dma.vmem_to_hbm [thread:$0]  %s1132, 128, %s1134, %s1118
        $region64: #{tpu_custom_call.1} parent=59 // pred_fallthru
          _
      $region60: #{tpu_custom_call.1} parent=5 // pred_fallthru
        _
      %p1137 = scmp.le.s32.totalorder 2, %s19
      // Predicated region
      $region65: #{tpu_custom_call.1} parent=5 // pred_check
        %p1138 = pneg %p1137
      $region66: #{tpu_custom_call.1} parent=5 // pred_check_branch
        %1140 = sbr.rel (%p1138) target = $region68
      $region67: #{tpu_custom_call.1} parent=5 // pred_region
        %s1141 = ssub.s32 %s19, 2
        // Predicated region
        $region69: #{tpu_custom_call.1} parent=67 // pred_check
          %p1142 = pneg %p263
        $region70: #{tpu_custom_call.1} parent=67 // pred_check_branch
          %1144 = sbr.rel (%p1142) target = $region72
        $region71: #{tpu_custom_call.1} parent=67 // pred_region
          %s1145 = sand.u32 %s248, 1
          %s1146 = scalar_lea.sflag [#allocation4], %s1145
          %s1147 = sand.u32 %s248, 1
          %s1148 = smul.addr %s1147, 8
          %s1149 = scalar_lea.vmem [#allocation3], %s1148
          %1151 = dma.done %s1146, 128
        $region72: #{tpu_custom_call.1} parent=67 // pred_fallthru
          _
      $region68: #{tpu_custom_call.1} parent=5 // pred_fallthru
        _
    $region6: #{tpu_custom_call.1} parent=1 // loop_footer
      %s23 = sadd.s32 1, %s19
    $region7: #{tpu_custom_call.1} parent=1 // loop_footer_branch
      %18 = sbr.rel target = $region3
    $region8: #{tpu_custom_call.1} parent=1 // loop_exit
      _
    %1152 = vsyncpa [#allocation4], 1
    %s1153 = scalar_lea.sflag [#allocation4], 1
    %1154 = vsyncpa %s1153, 1

</llo_original>
